<compile_context>
chip_gen: v5e
topology: v5e:2x2
jax: 0.10.0
libtpu: 0.0.40
codegen_flags: <defaults>
</compile_context>

<pallas_src>
import functools

import jax
import jax.numpy as jnp
from jax.experimental import pallas as pl
from jax.experimental.pallas import tpu as pltpu


def _awc_kernel(x_ref, wg_ref, bg_ref, ww_ref, bw_ref, wc_ref, bc_ref,
                out_ref, m_sc, l_sc, acc_sc, *, n_actual):
    i = pl.program_id(0)
    tile_n = x_ref.shape[0]
    d = wg_ref.shape[1] // 2

    # --- init online-softmax state on the first N tile --------------------
    @pl.when(i == 0)
    def _():
        m_sc[...] = jnp.full(m_sc.shape, -1e30, jnp.float32)
        l_sc[...] = jnp.zeros(l_sc.shape, jnp.float32)
        acc_sc[...] = jnp.zeros(acc_sc.shape, jnp.float32)

    x_blk = x_ref[...]                                        # (tile_n, L), stream dtype

    # --- fused gated-attention projection (one MXU pass over x) -----------
    gate = jnp.dot(x_blk, wg_ref[...],
                   preferred_element_type=jnp.float32)        # (tile_n, 2D) f32
    gate = gate + bg_ref[...]
    av = jnp.tanh(gate[:, :d])                                # (tile_n, D)
    au = jax.nn.sigmoid(gate[:, d:])                          # (tile_n, D)
    gated = av * au                                           # f32

    # --- attention logits, lane-major (K, tile_n) --------------------------
    logits = jnp.einsum('dk,nd->kn', ww_ref[...], gated,
                        preferred_element_type=jnp.float32)   # (K, tile_n)
    logits = logits + bw_ref[...]                             # + (K, 1) bias

    # mask zero-padded rows of the last partial tile -> contribute exp(..)=0
    col = jax.lax.broadcasted_iota(jnp.int32, logits.shape, 1) + i * tile_n
    logits = jnp.where(col < n_actual, logits, jnp.float32(-1e30))

    # --- online softmax over the instance axis (lane reductions) -----------
    m_prev = m_sc[...]                                        # (K, 1)
    m_new = jnp.maximum(m_prev, jnp.max(logits, axis=-1, keepdims=True))
    alpha = jnp.exp(m_prev - m_new)                           # rescale of old state
    p = jnp.exp(logits - m_new)                               # (K, tile_n)
    l_sc[...] = alpha * l_sc[...] + jnp.sum(p, axis=-1, keepdims=True)
    acc_sc[...] = alpha * acc_sc[...] + jnp.dot(
        p.astype(x_blk.dtype), x_blk, preferred_element_type=jnp.float32)  # (K, L)
    m_sc[...] = m_new

    # --- finalize: normalize, classify, write ------------------------------
    @pl.when(i == pl.num_programs(0) - 1)
    def _():
        inv_l = pl.reciprocal(l_sc[...], approx=True)         # EUP slot, runs once
        afeat = acc_sc[...] * inv_l                           # (K, L) f32
        pred = jnp.dot(afeat, wc_ref[...],
                       preferred_element_type=jnp.float32) + bc_ref[...]
        out_ref[...] = pred.astype(out_ref.dtype)


def attention_with_classifier(x, params, *, tile_n=128, stream_dtype=jnp.bfloat16):
    """x: (N, L) float32; params: dict of torch-Linear weights stored transposed.

    tile_n sizing note: per-buffer x block is tile_n * L * itemsize bytes and is
    double-buffered; keep 2 * that + resident weights + (K, L) accumulator well
    under the scoped VMEM limit (default 16/32/32 MiB on v5e/v6e/v7x; 64 MiB
    physical on v7x).  tile_n=128..1024 is comfortable for L=512.
    """
    N, L = x.shape
    tile_n = max(8, (int(tile_n) + 7) // 8 * 8)               # keep (8,128)-aligned

    # fuse the V/U gate projections: one (L, 2D) weight, one (1, 2D) bias
    w_gate = jnp.concatenate([params['wv'], params['wu']], axis=1)   # (L, 2D)
    b_gate = jnp.concatenate([params['bv'], params['bu']], axis=1)   # (1, 2D)
    ww = params['ww'].astype(jnp.float32)                            # (D, K)
    bw_col = params['bw'].reshape(-1, 1).astype(jnp.float32)         # (K, 1)
    wc = params['wc'].astype(jnp.float32)                            # (L, C)
    bc = params['bc'].astype(jnp.float32)                            # (1, C)

    K = ww.shape[1]
    C = wc.shape[1]
    D2 = w_gate.shape[1]

    n_tiles = pl.cdiv(N, tile_n)
    n_pad = n_tiles * tile_n
    if n_pad != N:
        x = jnp.pad(x, ((0, n_pad - N), (0, 0)))              # padded rows are masked

    # stream the big operands (x, gate weight) in reduced precision; keep all
    # accumulation / activations / softmax in f32 inside the kernel.
    x = x.astype(stream_dtype)
    w_gate = w_gate.astype(stream_dtype)
    b_gate = b_gate.astype(jnp.float32)

    kernel = functools.partial(_awc_kernel, n_actual=N)

    grid_spec = pltpu.PrefetchScalarGridSpec(
        num_scalar_prefetch=0,
        grid=(n_tiles,),
        in_specs=[
            pl.BlockSpec((tile_n, L), lambda i: (i, 0)),      # x: streamed over N
            pl.BlockSpec((L, D2), lambda i: (0, 0)),          # fused gate weight (resident)
            pl.BlockSpec((1, D2), lambda i: (0, 0)),          # fused gate bias
            pl.BlockSpec((ww.shape[0], K), lambda i: (0, 0)), # Ww
            pl.BlockSpec((K, 1), lambda i: (0, 0)),           # bw (column)
            pl.BlockSpec((L, C), lambda i: (0, 0)),           # classifier weight
            pl.BlockSpec((1, C), lambda i: (0, 0)),           # classifier bias
        ],
        out_specs=pl.BlockSpec((K, C), lambda i: (0, 0)),
        scratch_shapes=[
            pltpu.VMEM((K, 1), jnp.float32),                  # running max m
            pltpu.VMEM((K, 1), jnp.float32),                  # running denom l
            pltpu.VMEM((K, L), jnp.float32),                  # running acc of p @ x
        ],
    )

    return pl.pallas_call(
        kernel,
        out_shape=jax.ShapeDtypeStruct((K, C), jnp.float32),
        grid_spec=grid_spec,
        # N axis carries the accumulator -> must be "arbitrary" (a batched-bag
        # leading axis, if added, would be the one marked "parallel").
        compiler_params=pltpu.CompilerParams(
            dimension_semantics=("arbitrary",)),
    )(x, w_gate, b_gate, ww, bw_col, wc, bc)


def init_params(key, L, D, K, num_cls):
    ks = jax.random.split(key, 8)
    scale_l = 1.0 / jnp.sqrt(L)
    scale_d = 1.0 / jnp.sqrt(D)
    return {
        # stored as (in_features, out_features), i.e. torch Linear weight^T
        'wv': jax.random.uniform(ks[0], (L, D), jnp.float32, -scale_l, scale_l),
        'bv': jax.random.uniform(ks[1], (1, D), jnp.float32, -scale_l, scale_l),
        'wu': jax.random.uniform(ks[2], (L, D), jnp.float32, -scale_l, scale_l),
        'bu': jax.random.uniform(ks[3], (1, D), jnp.float32, -scale_l, scale_l),
        'ww': jax.random.uniform(ks[4], (D, K), jnp.float32, -scale_d, scale_d),
        'bw': jax.random.uniform(ks[5], (1, K), jnp.float32, -scale_d, scale_d),
        'wc': jax.random.uniform(ks[6], (L, num_cls), jnp.float32, -scale_l, scale_l),
        'bc': jax.random.uniform(ks[7], (1, num_cls), jnp.float32, -scale_l, scale_l),
    }


def reference_forward(x, p):
    av = jnp.tanh(x @ p['wv'] + p['bv'])
    au = jax.nn.sigmoid(x @ p['wu'] + p['bu'])
    a = (av * au) @ p['ww'] + p['bw']          # (N, K)
    a = jax.nn.softmax(a.T, axis=1)            # (K, N)
    afeat = a @ x                              # (K, L)
    return afeat @ p['wc'] + p['bc']           # (K, num_cls)


if __name__ == "__main__":
    # Small shapes consistent with the module defaults (L=512, D=32, K=1, 2 classes).
    # N=300 with tile_n=128 exercises multi-tile streaming + a masked partial tile.
    N, L, D, K, num_cls = 300, 512, 32, 1, 2

    key = jax.random.PRNGKey(0)
    k_x, k_p = jax.random.split(key)
    x = jax.random.normal(k_x, (N, L), dtype=jnp.float32)
    params = init_params(k_p, L, D, K, num_cls)

    ref = reference_forward(x, params)

    # f32 streaming path: tight check of the tiled online-softmax structure.
    pred_f32 = jax.block_until_ready(
        attention_with_classifier(x, params, tile_n=128, stream_dtype=jnp.float32))
    assert pred_f32.shape == (K, num_cls)
    assert jnp.allclose(pred_f32, ref, atol=2e-2, rtol=2e-2), (pred_f32, ref)

    # bf16-streamed path (production default on v6e/v7x): halves HBM traffic of x.
    pred_bf16 = jax.block_until_ready(
        attention_with_classifier(x, params, tile_n=128, stream_dtype=jnp.bfloat16))
    assert pred_bf16.shape == (K, num_cls)
    assert jnp.allclose(pred_bf16, ref, atol=5e-2, rtol=5e-2), (pred_bf16, ref)

    print("KERNEL_OK")
</pallas_src>

<mosaic_0001>
module attributes {stable_mosaic.version = 11 : i64} {
  func.func @_awc_kernel(%arg0: i32, %arg1: memref<128x512xf32, #tpu.memory_space<vmem>>, %arg2: memref<512x64xf32, #tpu.memory_space<vmem>>, %arg3: memref<1x64xf32, #tpu.memory_space<vmem>>, %arg4: memref<32x1xf32, #tpu.memory_space<vmem>>, %arg5: memref<1x1xf32, #tpu.memory_space<vmem>>, %arg6: memref<512x2xf32, #tpu.memory_space<vmem>>, %arg7: memref<1x2xf32, #tpu.memory_space<vmem>>, %arg8: memref<1x2xf32, #tpu.memory_space<vmem>>, %arg9: memref<1x1xf32, #tpu.memory_space<vmem>>, %arg10: memref<1x1xf32, #tpu.memory_space<vmem>>, %arg11: memref<1x512xf32, #tpu.memory_space<vmem>>) attributes {dimension_semantics = [#tpu.dimension_semantics<arbitrary>], iteration_bounds = array<i64: 3>, scalar_prefetch = 0 : i64, scratch_operands = 3 : i64, tpu.core_type = #tpu.core_type<tc>, window_params = [{transform_indices = @transform_0, window_bounds = array<i64: 128, 512>}, {pipeline_mode = #tpu.pipeline_mode<synchronous>, transform_indices = @transform_1, window_bounds = array<i64: 512, 64>}, {pipeline_mode = #tpu.pipeline_mode<synchronous>, transform_indices = @transform_2, window_bounds = array<i64: 1, 64>}, {pipeline_mode = #tpu.pipeline_mode<synchronous>, transform_indices = @transform_3, window_bounds = array<i64: 32, 1>}, {pipeline_mode = #tpu.pipeline_mode<synchronous>, transform_indices = @transform_4, window_bounds = array<i64: 1, 1>}, {pipeline_mode = #tpu.pipeline_mode<synchronous>, transform_indices = @transform_5, window_bounds = array<i64: 512, 2>}, {pipeline_mode = #tpu.pipeline_mode<synchronous>, transform_indices = @transform_6, window_bounds = array<i64: 1, 2>}, {pipeline_mode = #tpu.pipeline_mode<synchronous>, transform_indices = @transform_7, window_bounds = array<i64: 1, 2>}]} {
    %c0_i32 = arith.constant 0 : i32
    %0 = arith.cmpi eq, %arg0, %c0_i32 : i32
    %1 = arith.extui %0 : i1 to i32
    %c0_i32_0 = arith.constant 0 : i32
    %2 = arith.cmpi ne, %1, %c0_i32_0 : i32
    scf.if %2 {
      %cst_29 = arith.constant -1.000000e+30 : f32
      %56 = vector.broadcast %cst_29 : f32 to vector<1x1xf32>
      %c0_30 = arith.constant 0 : index
      %c0_31 = arith.constant 0 : index
      %57 = vector.load %arg9[%c0_30, %c0_31] : memref<1x1xf32, #tpu.memory_space<vmem>>, vector<1x1xf32>
      tpu.vector_store %arg9[%c0_30, %c0_31], %56 {strides = array<i32>} : memref<1x1xf32, #tpu.memory_space<vmem>>, vector<1x1xf32>,
      %cst_32 = arith.constant 0.000000e+00 : f32
      %58 = vector.broadcast %cst_32 : f32 to vector<1x1xf32>
      %c0_33 = arith.constant 0 : index
      %c0_34 = arith.constant 0 : index
      %59 = vector.load %arg10[%c0_33, %c0_34] : memref<1x1xf32, #tpu.memory_space<vmem>>, vector<1x1xf32>
      tpu.vector_store %arg10[%c0_33, %c0_34], %58 {strides = array<i32>} : memref<1x1xf32, #tpu.memory_space<vmem>>, vector<1x1xf32>,
      %cst_35 = arith.constant 0.000000e+00 : f32
      %60 = vector.broadcast %cst_35 : f32 to vector<1x512xf32>
      %c0_36 = arith.constant 0 : index
      %c0_37 = arith.constant 0 : index
      %61 = vector.load %arg11[%c0_36, %c0_37] : memref<1x512xf32, #tpu.memory_space<vmem>>, vector<1x512xf32>
      tpu.vector_store %arg11[%c0_36, %c0_37], %60 {strides = array<i32>} : memref<1x512xf32, #tpu.memory_space<vmem>>, vector<1x512xf32>,
    } else {
    }
    %c0 = arith.constant 0 : index
    %c0_1 = arith.constant 0 : index
    %3 = vector.load %arg1[%c0, %c0_1] : memref<128x512xf32, #tpu.memory_space<vmem>>, vector<128x512xf32>
    %c0_2 = arith.constant 0 : index
    %c0_3 = arith.constant 0 : index
    %4 = vector.load %arg2[%c0_2, %c0_3] : memref<512x64xf32, #tpu.memory_space<vmem>>, vector<512x64xf32>
    %cst = arith.constant dense<0.000000e+00> : vector<128x64xf32>
    %5 = tpu.matmul %3, %4, %cst {dimension_numbers = #tpu.dot_dimension_numbers<[1], [0], [0], [1], [0, 0, 1, 1], [], []>} : vector<128x512xf32>, vector<512x64xf32>, vector<128x64xf32> -> vector<128x64xf32>
    %c0_4 = arith.constant 0 : index
    %c0_5 = arith.constant 0 : index
    %6 = vector.load %arg3[%c0_4, %c0_5] : memref<1x64xf32, #tpu.memory_space<vmem>>, vector<1x64xf32>
    %7 = vector.broadcast %6 : vector<1x64xf32> to vector<128x64xf32>
    %8 = arith.addf %5, %7 : vector<128x64xf32>
    %9 = vector.extract_strided_slice %8 {offsets = [0, 0], sizes = [128, 32], strides = [1, 1]} : vector<128x64xf32> to vector<128x32xf32>
    %10 = math.tanh %9 : vector<128x32xf32>
    %11 = vector.extract_strided_slice %8 {offsets = [0, 32], sizes = [128, 32], strides = [1, 1]} : vector<128x64xf32> to vector<128x32xf32>
    %12 = arith.negf %11 : vector<128x32xf32>
    %13 = math.exp %12 : vector<128x32xf32>
    %cst_6 = arith.constant 1.000000e+00 : f32
    %14 = vector.broadcast %cst_6 : f32 to vector<128x32xf32>
    %15 = arith.addf %14, %13 : vector<128x32xf32>
    %16 = arith.divf %14, %15 : vector<128x32xf32>
    %17 = arith.mulf %10, %16 : vector<128x32xf32>
    %c0_7 = arith.constant 0 : index
    %c0_8 = arith.constant 0 : index
    %18 = vector.load %arg4[%c0_7, %c0_8] : memref<32x1xf32, #tpu.memory_space<vmem>>, vector<32x1xf32>
    "tpu.trace_start"() <{level = 10 : i32, message = "dk,nd->kn"}> : () -> ()
    %cst_9 = arith.constant dense<0.000000e+00> : vector<1x128xf32>
    %19 = tpu.matmul %18, %17, %cst_9 {dimension_numbers = #tpu.dot_dimension_numbers<[0], [1], [1], [0], [0, 1, 1, 0], [], []>} : vector<32x1xf32>, vector<128x32xf32>, vector<1x128xf32> -> vector<1x128xf32>
    "tpu.trace_stop"() : () -> ()
    %c0_10 = arith.constant 0 : index
    %c0_11 = arith.constant 0 : index
    %20 = vector.load %arg5[%c0_10, %c0_11] : memref<1x1xf32, #tpu.memory_space<vmem>>, vector<1x1xf32>
    %21 = vector.broadcast %20 : vector<1x1xf32> to vector<1x128xf32>
    %22 = arith.addf %19, %21 : vector<1x128xf32>
    %23 = tpu.iota {dimensions = array<i32: 1>} : vector<1x128xi32>
    %c128_i32 = arith.constant 128 : i32
    %24 = arith.muli %arg0, %c128_i32 : i32
    %25 = vector.broadcast %24 : i32 to vector<1x128xi32>
    %26 = arith.addi %23, %25 : vector<1x128xi32>
    %c300_i32 = arith.constant 300 : i32
    %27 = vector.broadcast %c300_i32 : i32 to vector<1x128xi32>
    %28 = arith.cmpi slt, %26, %27 : vector<1x128xi32>
    %cst_12 = arith.constant -1.000000e+30 : f32
    %29 = vector.broadcast %cst_12 : f32 to vector<1x128xf32>
    %30 = arith.select %28, %22, %29 : vector<1x128xi1>, vector<1x128xf32>
    %c0_13 = arith.constant 0 : index
    %c0_14 = arith.constant 0 : index
    %31 = vector.load %arg9[%c0_13, %c0_14] : memref<1x1xf32, #tpu.memory_space<vmem>>, vector<1x1xf32>
    %cst_15 = arith.constant dense<0xFF800000> : vector<1xf32>
    %32 = vector.multi_reduction <maximumf>, %30, %cst_15 [1] : vector<1x128xf32> to vector<1xf32>
    %33 = vector.shape_cast %32 : vector<1xf32> to vector<1x1xf32>
    %34 = arith.maximumf %31, %33 : vector<1x1xf32>
    %35 = arith.subf %31, %34 : vector<1x1xf32>
    %36 = math.exp %35 : vector<1x1xf32>
    %37 = vector.broadcast %34 : vector<1x1xf32> to vector<1x128xf32>
    %38 = arith.subf %30, %37 : vector<1x128xf32>
    %39 = math.exp %38 : vector<1x128xf32>
    %c0_16 = arith.constant 0 : index
    %c0_17 = arith.constant 0 : index
    %40 = vector.load %arg10[%c0_16, %c0_17] : memref<1x1xf32, #tpu.memory_space<vmem>>, vector<1x1xf32>
    %41 = arith.mulf %36, %40 : vector<1x1xf32>
    %cst_18 = arith.constant dense<0.000000e+00> : vector<1xf32>
    %42 = vector.multi_reduction <add>, %39, %cst_18 [1] : vector<1x128xf32> to vector<1xf32>
    %43 = vector.shape_cast %42 : vector<1xf32> to vector<1x1xf32>
    %44 = arith.addf %41, %43 : vector<1x1xf32>
    %c0_19 = arith.constant 0 : index
    %c0_20 = arith.constant 0 : index
    %45 = vector.load %arg10[%c0_19, %c0_20] : memref<1x1xf32, #tpu.memory_space<vmem>>, vector<1x1xf32>
    tpu.vector_store %arg10[%c0_19, %c0_20], %44 {strides = array<i32>} : memref<1x1xf32, #tpu.memory_space<vmem>>, vector<1x1xf32>,
    %c0_21 = arith.constant 0 : index
    %c0_22 = arith.constant 0 : index
    %46 = vector.load %arg11[%c0_21, %c0_22] : memref<1x512xf32, #tpu.memory_space<vmem>>, vector<1x512xf32>
    %47 = vector.broadcast %36 : vector<1x1xf32> to vector<1x512xf32>
    %48 = arith.mulf %47, %46 : vector<1x512xf32>
    %cst_23 = arith.constant dense<0.000000e+00> : vector<1x512xf32>
    %49 = tpu.matmul %39, %3, %cst_23 {dimension_numbers = #tpu.dot_dimension_numbers<[1], [0], [0], [1], [0, 0, 1, 1], [], []>} : vector<1x128xf32>, vector<128x512xf32>, vector<1x512xf32> -> vector<1x512xf32>
    %50 = arith.addf %48, %49 : vector<1x512xf32>
    %c0_24 = arith.constant 0 : index
    %c0_25 = arith.constant 0 : index
    %51 = vector.load %arg11[%c0_24, %c0_25] : memref<1x512xf32, #tpu.memory_space<vmem>>, vector<1x512xf32>
    tpu.vector_store %arg11[%c0_24, %c0_25], %50 {strides = array<i32>} : memref<1x512xf32, #tpu.memory_space<vmem>>, vector<1x512xf32>,
    %c0_26 = arith.constant 0 : index
    %c0_27 = arith.constant 0 : index
    %52 = vector.load %arg9[%c0_26, %c0_27] : memref<1x1xf32, #tpu.memory_space<vmem>>, vector<1x1xf32>
    tpu.vector_store %arg9[%c0_26, %c0_27], %34 {strides = array<i32>} : memref<1x1xf32, #tpu.memory_space<vmem>>, vector<1x1xf32>,
    %c2_i32 = arith.constant 2 : i32
    %53 = arith.cmpi eq, %arg0, %c2_i32 : i32
    %54 = arith.extui %53 : i1 to i32
    %c0_i32_28 = arith.constant 0 : i32
    %55 = arith.cmpi ne, %54, %c0_i32_28 : i32
    scf.if %55 {
      %c0_29 = arith.constant 0 : index
      %c0_30 = arith.constant 0 : index
      %56 = vector.load %arg10[%c0_29, %c0_30] : memref<1x1xf32, #tpu.memory_space<vmem>>, vector<1x1xf32>
      %57 = tpu.reciprocal %56 {approx = true} : vector<1x1xf32> -> vector<1x1xf32>
      %c0_31 = arith.constant 0 : index
      %c0_32 = arith.constant 0 : index
      %58 = vector.load %arg11[%c0_31, %c0_32] : memref<1x512xf32, #tpu.memory_space<vmem>>, vector<1x512xf32>
      %59 = vector.broadcast %57 : vector<1x1xf32> to vector<1x512xf32>
      %60 = arith.mulf %58, %59 : vector<1x512xf32>
      %c0_33 = arith.constant 0 : index
      %c0_34 = arith.constant 0 : index
      %61 = vector.load %arg6[%c0_33, %c0_34] : memref<512x2xf32, #tpu.memory_space<vmem>>, vector<512x2xf32>
      %cst_35 = arith.constant dense<0.000000e+00> : vector<1x2xf32>
      %62 = tpu.matmul %60, %61, %cst_35 {dimension_numbers = #tpu.dot_dimension_numbers<[1], [0], [0], [1], [0, 0, 1, 1], [], []>} : vector<1x512xf32>, vector<512x2xf32>, vector<1x2xf32> -> vector<1x2xf32>
      %c0_36 = arith.constant 0 : index
      %c0_37 = arith.constant 0 : index
      %63 = vector.load %arg7[%c0_36, %c0_37] : memref<1x2xf32, #tpu.memory_space<vmem>>, vector<1x2xf32>
      %64 = arith.addf %62, %63 : vector<1x2xf32>
      %c0_38 = arith.constant 0 : index
      %c0_39 = arith.constant 0 : index
      %65 = vector.load %arg8[%c0_38, %c0_39] : memref<1x2xf32, #tpu.memory_space<vmem>>, vector<1x2xf32>
      tpu.vector_store %arg8[%c0_38, %c0_39], %64 {strides = array<i32>} : memref<1x2xf32, #tpu.memory_space<vmem>>, vector<1x2xf32>,
    } else {
    }
    return
  }
  func.func @transform_0(%arg0: i32) -> (i32, i32) {
    %c0_i32 = arith.constant 0 : i32
    %c0_i32_0 = arith.constant 0 : i32
    return %arg0, %c0_i32 : i32, i32
  }
  func.func @transform_1(%arg0: i32) -> (i32, i32) {
    %c0_i32 = arith.constant 0 : i32
    %c0_i32_0 = arith.constant 0 : i32
    %c0_i32_1 = arith.constant 0 : i32
    return %c0_i32, %c0_i32_0 : i32, i32
  }
  func.func @transform_2(%arg0: i32) -> (i32, i32) {
    %c0_i32 = arith.constant 0 : i32
    %c0_i32_0 = arith.constant 0 : i32
    %c0_i32_1 = arith.constant 0 : i32
    return %c0_i32, %c0_i32_0 : i32, i32
  }
  func.func @transform_3(%arg0: i32) -> (i32, i32) {
    %c0_i32 = arith.constant 0 : i32
    %c0_i32_0 = arith.constant 0 : i32
    %c0_i32_1 = arith.constant 0 : i32
    return %c0_i32, %c0_i32_0 : i32, i32
  }
  func.func @transform_4(%arg0: i32) -> (i32, i32) {
    %c0_i32 = arith.constant 0 : i32
    %c0_i32_0 = arith.constant 0 : i32
    %c0_i32_1 = arith.constant 0 : i32
    return %c0_i32, %c0_i32_0 : i32, i32
  }
  func.func @transform_5(%arg0: i32) -> (i32, i32) {
    %c0_i32 = arith.constant 0 : i32
    %c0_i32_0 = arith.constant 0 : i32
    %c0_i32_1 = arith.constant 0 : i32
    return %c0_i32, %c0_i32_0 : i32, i32
  }
  func.func @transform_6(%arg0: i32) -> (i32, i32) {
    %c0_i32 = arith.constant 0 : i32
    %c0_i32_0 = arith.constant 0 : i32
    %c0_i32_1 = arith.constant 0 : i32
    return %c0_i32, %c0_i32_0 : i32, i32
  }
  func.func @transform_7(%arg0: i32) -> (i32, i32) {
    %c0_i32 = arith.constant 0 : i32
    %c0_i32_0 = arith.constant 0 : i32
    %c0_i32_1 = arith.constant 0 : i32
    return %c0_i32, %c0_i32_0 : i32, i32
  }
}

</mosaic_0001>

<llo_original>
// kernel: tpu_custom_call.1
$region0: #{tpu_custom_call.1}
  #allocation0 [shape = 'u32[]', space=smem, size = 0x4, offset = 0x4, fixed_abs, tag = 'smem constant byte address 0x4 - core index']
  #allocation1 [shape = 'u32[72,128]{1,0:T(1,128)}', space=vmem, size = 0x9000, scoped, tag = 'internal scratch']
  #allocation2 [shape = 'f32[1,1]{1,0:T(1,128)}', space=vmem, size = 0x200, scoped, tag = 'scratch operand']
  #allocation3 [shape = 'f32[1,1]{1,0:T(1,128)}', space=vmem, size = 0x200, scoped, tag = 'scratch operand']
  #allocation4 [shape = 'f32[1,512]{1,0:T(1,128)}', space=vmem, size = 0x800, scoped, tag = 'scratch operand']
  #allocation5 [shape = 'f32[1,1]{1,0:T(1,128)S(1)}', space=vmem, size = 0x200, scoped, tag = 'scoped memory for tpu_custom_call.1']
  %s0 = inlined_call_operand.hbm [shape: f32[384,512], index: 0, kind: input, shape index: {}]
  %s1 = inlined_call_operand.vmem [shape: f32[512,64], index: 1, kind: input, shape index: {}]
  %s2 = inlined_call_operand.vmem [shape: f32[1,64], index: 2, kind: input, shape index: {}]
  %s3 = inlined_call_operand.vmem [shape: f32[32,1], index: 3, kind: input, shape index: {}]
  %s4 = inlined_call_operand.<no memory space> [shape: f32[1,1], index: 4, kind: input, shape index: {}]
  %s5 = inlined_call_operand.vmem [shape: f32[512,2], index: 5, kind: input, shape index: {}]
  %s6 = inlined_call_operand.vmem [shape: f32[1,2], index: 6, kind: input, shape index: {}]
  %s7 = inlined_call_operand.hbm [shape: f32[1,2], index: 7, kind: output, shape index: {}]
  %s8 = sld [smem:[#allocation0]]
  $region73: #{tpu_custom_call.1} parent=0
    _
  %s10 = ssub.s32 1, %s8
  %s11 = scalar_select 0, %s10, %s8
  %v12 = vstv %s4
  %13 = vst [vmem:[#allocation5] sm:$0x1] %v12
  $region1: #{tpu_custom_call.1} parent=0
    #allocation6 [shape = 'u8[524288]{0}', space=vmem, size = 0x80000, scoped, tag = 'input window, operand 0']
    #allocation7 [shape = 's32[2]{0}', space=sflag, size = 0x8, scoped, tag = 'scoped memory for tpu_custom_call.1']
    #allocation8 [shape = 's32[2]{0}', space=sflag, size = 0x8, scoped, tag = 'scoped memory for tpu_custom_call.1']
    #allocation9 [shape = 'u8[512]{0}', space=vmem, size = 0x400, scoped, tag = 'output window, operand 0, single buffered']
    %14 = vsyncpa [#allocation7], 0
    %s15 = scalar_lea.sflag [#allocation7], 1
    %16 = vsyncpa %s15, 0
    %17 = vsyncpa [#allocation8], 0
    loop: start=0, step=1, limit=5
    $region2: #{tpu_custom_call.1} parent=1 // loop_pre_header
      _
    $region3: #{tpu_custom_call.1} parent=1 // loop_header
      %s19 = sphi 0, %s23
      %p20 = scmp.ge.s32.totalorder %s19, 5
      %s29 = sphi 0, %s31
      %s32 = sphi 0, %s29
      %s33 = sphi 0, %s32
      %s49 = sphi 0, %s33
      %s53 = sphi 0, %s53
      %s55 = sphi 0, %s53
      %s56 = sphi 0, %s55
      %s70 = sphi 0, %s56
      %s74 = sphi 0, %s74
      %s76 = sphi 0, %s74
      %s77 = sphi 0, %s76
      %s91 = sphi 0, %s77
      %s95 = sphi 0, %s95
      %s97 = sphi 0, %s95
      %s98 = sphi 0, %s97
      %s112 = sphi 0, %s98
      %s116 = sphi 0, %s116
      %s118 = sphi 0, %s116
      %s119 = sphi 0, %s118
      %s133 = sphi 0, %s119
      %s137 = sphi 0, %s137
      %s139 = sphi 0, %s137
      %s140 = sphi 0, %s139
      %s154 = sphi 0, %s140
      %s158 = sphi 0, %s158
      %s160 = sphi 0, %s158
      %s161 = sphi 0, %s160
      %s175 = sphi 0, %s161
      %s179 = sphi 0, %s179
      %s181 = sphi 0, %s179
      %s182 = sphi 0, %s181
      %s196 = sphi 0, %s182
    $region4: #{tpu_custom_call.1} parent=1 // loop_header_branch
      %22 = sbr.rel (%p20) target = $region8
    $region5: #{tpu_custom_call.1} parent=1 // loop_body
      %s24 = ssub.s32 %s19, 1
      %s25 = ssub.s32 %s19, 2
      %s26 = sadd.s32 %s19, 1
      %s27 = ssub.s32 %s19, %s26
      %p28 = scmp.eq.s32.totalorder %s27, 0
      %s30 = sadd.s32 %s29, 1
      %s31 = scalar_select %p28, %s29, %s30
      %p34 = pneg %p28
      %p35 = scmp.eq.s32.totalorder %s19, 2
      %p36 = por %p34, %p35
      %p37 = scmp.ne.s32.totalorder %s29, %s32
      %p38 = scmp.eq.s32.totalorder %s19, 0
      %p39 = por %p37, %p38
      %p40 = scmp.ne.s32.totalorder %s29, %s32
      %p41 = scmp.eq.s32.totalorder %s24, 2
      %p42 = por %p40, %p41
      %p43 = scmp.ne.s32.totalorder %s32, %s33
      %p44 = scmp.eq.s32.totalorder %s24, 0
      %p45 = por %p43, %p44
      %p46 = scmp.ne.s32.totalorder %s32, %s33
      %p47 = scmp.eq.s32.totalorder %s25, 2
      %p48 = por %p46, %p47
      %p50 = scmp.ne.s32.totalorder %s33, %s49
      %p51 = scmp.eq.s32.totalorder %s25, 0
      %p52 = por %p50, %p51
      %s54 = sadd.s32 %s53, 1
      %p57 = scmp.eq.s32.totalorder %s19, 2
      %p58 = scmp.ne.s32.totalorder %s53, %s55
      %p59 = scmp.eq.s32.totalorder %s19, 0
      %p60 = por %p58, %p59
      %p61 = scmp.ne.s32.totalorder %s53, %s55
      %p62 = scmp.eq.s32.totalorder %s24, 2
      %p63 = por %p61, %p62
      %p64 = scmp.ne.s32.totalorder %s55, %s56
      %p65 = scmp.eq.s32.totalorder %s24, 0
      %p66 = por %p64, %p65
      %p67 = scmp.ne.s32.totalorder %s55, %s56
      %p68 = scmp.eq.s32.totalorder %s25, 2
      %p69 = por %p67, %p68
      %p71 = scmp.ne.s32.totalorder %s56, %s70
      %p72 = scmp.eq.s32.totalorder %s25, 0
      %p73 = por %p71, %p72
      %s75 = sadd.s32 %s74, 1
      %p78 = scmp.eq.s32.totalorder %s19, 2
      %p79 = scmp.ne.s32.totalorder %s74, %s76
      %p80 = scmp.eq.s32.totalorder %s19, 0
      %p81 = por %p79, %p80
      %p82 = scmp.ne.s32.totalorder %s74, %s76
      %p83 = scmp.eq.s32.totalorder %s24, 2
      %p84 = por %p82, %p83
      %p85 = scmp.ne.s32.totalorder %s76, %s77
      %p86 = scmp.eq.s32.totalorder %s24, 0
      %p87 = por %p85, %p86
      %p88 = scmp.ne.s32.totalorder %s76, %s77
      %p89 = scmp.eq.s32.totalorder %s25, 2
      %p90 = por %p88, %p89
      %p92 = scmp.ne.s32.totalorder %s77, %s91
      %p93 = scmp.eq.s32.totalorder %s25, 0
      %p94 = por %p92, %p93
      %s96 = sadd.s32 %s95, 1
      %p99 = scmp.eq.s32.totalorder %s19, 2
      %p100 = scmp.ne.s32.totalorder %s95, %s97
      %p101 = scmp.eq.s32.totalorder %s19, 0
      %p102 = por %p100, %p101
      %p103 = scmp.ne.s32.totalorder %s95, %s97
      %p104 = scmp.eq.s32.totalorder %s24, 2
      %p105 = por %p103, %p104
      %p106 = scmp.ne.s32.totalorder %s97, %s98
      %p107 = scmp.eq.s32.totalorder %s24, 0
      %p108 = por %p106, %p107
      %p109 = scmp.ne.s32.totalorder %s97, %s98
      %p110 = scmp.eq.s32.totalorder %s25, 2
      %p111 = por %p109, %p110
      %p113 = scmp.ne.s32.totalorder %s98, %s112
      %p114 = scmp.eq.s32.totalorder %s25, 0
      %p115 = por %p113, %p114
      %s117 = sadd.s32 %s116, 1
      %p120 = scmp.eq.s32.totalorder %s19, 2
      %p121 = scmp.ne.s32.totalorder %s116, %s118
      %p122 = scmp.eq.s32.totalorder %s19, 0
      %p123 = por %p121, %p122
      %p124 = scmp.ne.s32.totalorder %s116, %s118
      %p125 = scmp.eq.s32.totalorder %s24, 2
      %p126 = por %p124, %p125
      %p127 = scmp.ne.s32.totalorder %s118, %s119
      %p128 = scmp.eq.s32.totalorder %s24, 0
      %p129 = por %p127, %p128
      %p130 = scmp.ne.s32.totalorder %s118, %s119
      %p131 = scmp.eq.s32.totalorder %s25, 2
      %p132 = por %p130, %p131
      %p134 = scmp.ne.s32.totalorder %s119, %s133
      %p135 = scmp.eq.s32.totalorder %s25, 0
      %p136 = por %p134, %p135
      %s138 = sadd.s32 %s137, 1
      %p141 = scmp.eq.s32.totalorder %s19, 2
      %p142 = scmp.ne.s32.totalorder %s137, %s139
      %p143 = scmp.eq.s32.totalorder %s19, 0
      %p144 = por %p142, %p143
      %p145 = scmp.ne.s32.totalorder %s137, %s139
      %p146 = scmp.eq.s32.totalorder %s24, 2
      %p147 = por %p145, %p146
      %p148 = scmp.ne.s32.totalorder %s139, %s140
      %p149 = scmp.eq.s32.totalorder %s24, 0
      %p150 = por %p148, %p149
      %p151 = scmp.ne.s32.totalorder %s139, %s140
      %p152 = scmp.eq.s32.totalorder %s25, 2
      %p153 = por %p151, %p152
      %p155 = scmp.ne.s32.totalorder %s140, %s154
      %p156 = scmp.eq.s32.totalorder %s25, 0
      %p157 = por %p155, %p156
      %s159 = sadd.s32 %s158, 1
      %p162 = scmp.eq.s32.totalorder %s19, 2
      %p163 = scmp.ne.s32.totalorder %s158, %s160
      %p164 = scmp.eq.s32.totalorder %s19, 0
      %p165 = por %p163, %p164
      %p166 = scmp.ne.s32.totalorder %s158, %s160
      %p167 = scmp.eq.s32.totalorder %s24, 2
      %p168 = por %p166, %p167
      %p169 = scmp.ne.s32.totalorder %s160, %s161
      %p170 = scmp.eq.s32.totalorder %s24, 0
      %p171 = por %p169, %p170
      %p172 = scmp.ne.s32.totalorder %s160, %s161
      %p173 = scmp.eq.s32.totalorder %s25, 2
      %p174 = por %p172, %p173
      %p176 = scmp.ne.s32.totalorder %s161, %s175
      %p177 = scmp.eq.s32.totalorder %s25, 0
      %p178 = por %p176, %p177
      %s180 = sadd.s32 %s179, 1
      %p183 = scmp.eq.s32.totalorder %s19, 2
      %p184 = scmp.ne.s32.totalorder %s179, %s181
      %p185 = scmp.eq.s32.totalorder %s19, 0
      %p186 = por %p184, %p185
      %p187 = scmp.ne.s32.totalorder %s179, %s181
      %p188 = scmp.eq.s32.totalorder %s24, 2
      %p189 = por %p187, %p188
      %p190 = scmp.ne.s32.totalorder %s181, %s182
      %p191 = scmp.eq.s32.totalorder %s24, 0
      %p192 = por %p190, %p191
      %p193 = scmp.ne.s32.totalorder %s181, %s182
      %p194 = scmp.eq.s32.totalorder %s25, 2
      %p195 = por %p193, %p194
      %p197 = scmp.ne.s32.totalorder %s182, %s196
      %p198 = scmp.eq.s32.totalorder %s25, 0
      %p199 = por %p197, %p198
      %p200 = scmp.le.s32.totalorder 1, %s19
      %p201 = scmp.lt.s32.totalorder %s19, 4
      %p202 = pnand %p200, %p201
      %p203 = pneg %p202
      // Predicated region
      $region9: #{tpu_custom_call.1} parent=5 // pred_check
        _
      $region10: #{tpu_custom_call.1} parent=5 // pred_check_branch
        %205 = sbr.rel (%p202) target = $region12
      $region11: #{tpu_custom_call.1} parent=5 // pred_region
        %s206 = ssub.s32 %s19, 1
        // Predicated region
        $region13: #{tpu_custom_call.1} parent=11 // pred_check
          %p207 = pneg %p66
        $region14: #{tpu_custom_call.1} parent=11 // pred_check_branch
          %209 = sbr.rel (%p207) target = $region16
        $region15: #{tpu_custom_call.1} parent=11 // pred_region
          _
        $region16: #{tpu_custom_call.1} parent=11 // pred_fallthru
          _
        // Predicated region
        $region17: #{tpu_custom_call.1} parent=11 // pred_check
          %p210 = pneg %p87
        $region18: #{tpu_custom_call.1} parent=11 // pred_check_branch
          %212 = sbr.rel (%p210) target = $region20
        $region19: #{tpu_custom_call.1} parent=11 // pred_region
          _
        $region20: #{tpu_custom_call.1} parent=11 // pred_fallthru
          _
        // Predicated region
        $region21: #{tpu_custom_call.1} parent=11 // pred_check
          %p213 = pneg %p108
        $region22: #{tpu_custom_call.1} parent=11 // pred_check_branch
          %215 = sbr.rel (%p213) target = $region24
        $region23: #{tpu_custom_call.1} parent=11 // pred_region
          _
        $region24: #{tpu_custom_call.1} parent=11 // pred_fallthru
          _
        // Predicated region
        $region25: #{tpu_custom_call.1} parent=11 // pred_check
          %p216 = pneg %p129
        $region26: #{tpu_custom_call.1} parent=11 // pred_check_branch
          %218 = sbr.rel (%p216) target = $region28
        $region27: #{tpu_custom_call.1} parent=11 // pred_region
          _
        $region28: #{tpu_custom_call.1} parent=11 // pred_fallthru
          _
        // Predicated region
        $region29: #{tpu_custom_call.1} parent=11 // pred_check
          %p219 = pneg %p150
        $region30: #{tpu_custom_call.1} parent=11 // pred_check_branch
          %221 = sbr.rel (%p219) target = $region32
        $region31: #{tpu_custom_call.1} parent=11 // pred_region
          _
        $region32: #{tpu_custom_call.1} parent=11 // pred_fallthru
          _
        // Predicated region
        $region33: #{tpu_custom_call.1} parent=11 // pred_check
          %p222 = pneg %p171
        $region34: #{tpu_custom_call.1} parent=11 // pred_check_branch
          %224 = sbr.rel (%p222) target = $region36
        $region35: #{tpu_custom_call.1} parent=11 // pred_region
          _
        $region36: #{tpu_custom_call.1} parent=11 // pred_fallthru
          _
      $region12: #{tpu_custom_call.1} parent=5 // pred_fallthru
        _
      %p225 = scmp.lt.s32.totalorder %s19, 3
      // Predicated region
      $region37: #{tpu_custom_call.1} parent=5 // pred_check
        %p226 = pneg %p225
      $region38: #{tpu_custom_call.1} parent=5 // pred_check_branch
        %228 = sbr.rel (%p226) target = $region40
      $region39: #{tpu_custom_call.1} parent=5 // pred_region
        // Predicated region
        $region41: #{tpu_custom_call.1} parent=39 // pred_check
          %p229 = pneg %p39
        $region42: #{tpu_custom_call.1} parent=39 // pred_check_branch
          %231 = sbr.rel (%p229) target = $region44
        $region43: #{tpu_custom_call.1} parent=39 // pred_region
          %s232 = sand.u32 %s29, 1
          %s233 = scalar_lea.sflag [#allocation7], %s232
          %s234 = sand.u32 %s29, 1
          %s235 = smul.addr %s234, 512
          %s236 = scalar_lea.vmem [#allocation6], %s235
          %s237 = smul.u32 16, %s19
          %239 = vsyncadd %s233, 0
          %s240 = smul.addr %s237, 4
          %s241 = smul.addr %s240, 8
          %s242 = scalar_lea.hbm %s0, %s241
          %s243 = sshll.u32 %s242, 4
          %s244 = int_to_ptr.hbm [resolvable:$true] %s243
          %s245 = sshll.u32 %s236, 4
          %s246 = int_to_ptr.vmem [resolvable:$true] %s245
          %251 = dma.hbm_to_vmem [thread:$0]  %s244, 8192, %s246, %s233, 512, 512, 32
        $region44: #{tpu_custom_call.1} parent=39 // pred_fallthru
          _
      $region40: #{tpu_custom_call.1} parent=5 // pred_fallthru
        _
      %p252 = scmp.le.s32.totalorder 1, %s19
      %p253 = scmp.lt.s32.totalorder %s19, 4
      %p254 = pnand %p252, %p253
      %p255 = pneg %p254
      // Predicated region
      $region45: #{tpu_custom_call.1} parent=5 // pred_check
        _
      $region46: #{tpu_custom_call.1} parent=5 // pred_check_branch
        %257 = sbr.rel (%p254) target = $region48
      $region47: #{tpu_custom_call.1} parent=5 // pred_region
        %s258 = ssub.s32 %s19, 1
        %s259 = sand.u32 %s32, 1
        %s260 = scalar_lea.sflag [#allocation7], %s259
        %s261 = sand.u32 %s32, 1
        %s262 = smul.addr %s261, 512
        %s263 = scalar_lea.vmem [#allocation6], %s262
        // Predicated region
        $region49: #{tpu_custom_call.1} parent=47 // pred_check
          %p264 = pneg %p45
        $region50: #{tpu_custom_call.1} parent=47 // pred_check_branch
          %266 = sbr.rel (%p264) target = $region52
        $region51: #{tpu_custom_call.1} parent=47 // pred_region
          %268 = dma.done %s260, 8192
        $region52: #{tpu_custom_call.1} parent=47 // pred_fallthru
          _
        %s269 = sand.u32 %s32, 1
        %s270 = scalar_lea.sflag [#allocation7], %s269
        %s271 = sand.u32 %s32, 1
        %s272 = smul.addr %s271, 512
        %s273 = scalar_lea.vmem [#allocation6], %s272
        %p274 = pneg %p45
        %p275 = pneg %p42
        %p276 = pneg %p66
        %p277 = pneg %p63
        %p278 = pneg %p87
        %p279 = pneg %p84
        %p280 = pneg %p108
        %p281 = pneg %p105
        %p282 = pneg %p129
        %p283 = pneg %p126
        %p284 = pneg %p150
        %p285 = pneg %p147
        %p286 = pneg %p171
        %p287 = pneg %p168
        %p288 = pneg %p192
        %p289 = pneg %p189
        %s290 = smul.u32 16, %s24
        %p291 = scmp.eq.s32.totalorder %s24, 0
        // Predicated region
        $region53: #{tpu_custom_call.1} parent=47 // pred_check
          %p292 = pneg %p291
        $region54: #{tpu_custom_call.1} parent=47 // pred_check_branch
          %294 = sbr.rel (%p292) target = $region56
        $region55: #{tpu_custom_call.1} parent=47 // pred_region
          %vm295 = vcmask 0
          %296 = vst.msk [vmem:[#allocation2] sm:$0x1] %vm295, -1e+30
          %297 = vst.msk [vmem:[#allocation3] sm:$0x1] %vm295, 0.0
          %v298 = vlaneseq
          %vm299 = vcmp.ge.s32.totalorder %v298, 0
          %vm300 = vcmp.lt.s32.totalorder %v298, 512
          %vm301 = vmand %vm299, %vm300
          %302 = vst.msk [vmem:[#allocation4] sm:$0xf] %vm301, 0.0
        $region56: #{tpu_custom_call.1} parent=47 // pred_fallthru
          _
        %v303 = vld [vmem:[%s263] sm:$0xff]
        %v304 = vld [vmem:[%s263 + $0x8] sm:$0xff]
        %v305 = vld [vmem:[%s263 + $0x10] sm:$0xff]
        %v306 = vld [vmem:[%s263 + $0x18] sm:$0xff]
        %v307 = vld [vmem:[%s263 + $0x20] sm:$0xff]
        %v308 = vld [vmem:[%s263 + $0x28] sm:$0xff]
        %v309 = vld [vmem:[%s263 + $0x30] sm:$0xff]
        %v310 = vld [vmem:[%s263 + $0x38] sm:$0xff]
        %v311 = vld [vmem:[%s263 + $0x40] sm:$0xff]
        %v312 = vld [vmem:[%s263 + $0x48] sm:$0xff]
        %v313 = vld [vmem:[%s263 + $0x50] sm:$0xff]
        %v314 = vld [vmem:[%s263 + $0x58] sm:$0xff]
        %v315 = vld [vmem:[%s263 + $0x60] sm:$0xff]
        %v316 = vld [vmem:[%s263 + $0x68] sm:$0xff]
        %v317 = vld [vmem:[%s263 + $0x70] sm:$0xff]
        %v318 = vld [vmem:[%s263 + $0x78] sm:$0xff]
        %v319 = vld [vmem:[%s263 + $0x80] sm:$0xff]
        %v320 = vld [vmem:[%s263 + $0x88] sm:$0xff]
        %v321 = vld [vmem:[%s263 + $0x90] sm:$0xff]
        %v322 = vld [vmem:[%s263 + $0x98] sm:$0xff]
        %v323 = vld [vmem:[%s263 + $0xa0] sm:$0xff]
        %v324 = vld [vmem:[%s263 + $0xa8] sm:$0xff]
        %v325 = vld [vmem:[%s263 + $0xb0] sm:$0xff]
        %v326 = vld [vmem:[%s263 + $0xb8] sm:$0xff]
        %v327 = vld [vmem:[%s263 + $0xc0] sm:$0xff]
        %v328 = vld [vmem:[%s263 + $0xc8] sm:$0xff]
        %v329 = vld [vmem:[%s263 + $0xd0] sm:$0xff]
        %v330 = vld [vmem:[%s263 + $0xd8] sm:$0xff]
        %v331 = vld [vmem:[%s263 + $0xe0] sm:$0xff]
        %v332 = vld [vmem:[%s263 + $0xe8] sm:$0xff]
        %v333 = vld [vmem:[%s263 + $0xf0] sm:$0xff]
        %v334 = vld [vmem:[%s263 + $0xf8] sm:$0xff]
        %v335 = vld [vmem:[%s263 + $0x100] sm:$0xff]
        %v336 = vld [vmem:[%s263 + $0x108] sm:$0xff]
        %v337 = vld [vmem:[%s263 + $0x110] sm:$0xff]
        %v338 = vld [vmem:[%s263 + $0x118] sm:$0xff]
        %v339 = vld [vmem:[%s263 + $0x120] sm:$0xff]
        %v340 = vld [vmem:[%s263 + $0x128] sm:$0xff]
        %v341 = vld [vmem:[%s263 + $0x130] sm:$0xff]
        %v342 = vld [vmem:[%s263 + $0x138] sm:$0xff]
        %v343 = vld [vmem:[%s263 + $0x140] sm:$0xff]
        %v344 = vld [vmem:[%s263 + $0x148] sm:$0xff]
        %v345 = vld [vmem:[%s263 + $0x150] sm:$0xff]
        %v346 = vld [vmem:[%s263 + $0x158] sm:$0xff]
        %v347 = vld [vmem:[%s263 + $0x160] sm:$0xff]
        %v348 = vld [vmem:[%s263 + $0x168] sm:$0xff]
        %v349 = vld [vmem:[%s263 + $0x170] sm:$0xff]
        %v350 = vld [vmem:[%s263 + $0x178] sm:$0xff]
        %v351 = vld [vmem:[%s263 + $0x180] sm:$0xff]
        %v352 = vld [vmem:[%s263 + $0x188] sm:$0xff]
        %v353 = vld [vmem:[%s263 + $0x190] sm:$0xff]
        %v354 = vld [vmem:[%s263 + $0x198] sm:$0xff]
        %v355 = vld [vmem:[%s263 + $0x1a0] sm:$0xff]
        %v356 = vld [vmem:[%s263 + $0x1a8] sm:$0xff]
        %v357 = vld [vmem:[%s263 + $0x1b0] sm:$0xff]
        %v358 = vld [vmem:[%s263 + $0x1b8] sm:$0xff]
        %v359 = vld [vmem:[%s263 + $0x1c0] sm:$0xff]
        %v360 = vld [vmem:[%s263 + $0x1c8] sm:$0xff]
        %v361 = vld [vmem:[%s263 + $0x1d0] sm:$0xff]
        %v362 = vld [vmem:[%s263 + $0x1d8] sm:$0xff]
        %v363 = vld [vmem:[%s263 + $0x1e0] sm:$0xff]
        %v364 = vld [vmem:[%s263 + $0x1e8] sm:$0xff]
        %v365 = vld [vmem:[%s263 + $0x1f0] sm:$0xff]
        %v366 = vld [vmem:[%s263 + $0x1f8] sm:$0xff]
        %v367 = vld [vmem:[%s1] sm:$0xff]
        %v368 = vld [vmem:[%s1 + $0x8] sm:$0xff]
        %v369 = vld [vmem:[%s1 + $0x10] sm:$0xff]
        %v370 = vld [vmem:[%s1 + $0x18] sm:$0xff]
        %v371 = vld [vmem:[%s1 + $0x20] sm:$0xff]
        %v372 = vld [vmem:[%s1 + $0x28] sm:$0xff]
        %v373 = vld [vmem:[%s1 + $0x30] sm:$0xff]
        %v374 = vld [vmem:[%s1 + $0x38] sm:$0xff]
        %v375 = vld [vmem:[%s1 + $0x40] sm:$0xff]
        %v376 = vld [vmem:[%s1 + $0x48] sm:$0xff]
        %v377 = vld [vmem:[%s1 + $0x50] sm:$0xff]
        %v378 = vld [vmem:[%s1 + $0x58] sm:$0xff]
        %v379 = vld [vmem:[%s1 + $0x60] sm:$0xff]
        %v380 = vld [vmem:[%s1 + $0x68] sm:$0xff]
        %v381 = vld [vmem:[%s1 + $0x70] sm:$0xff]
        %v382 = vld [vmem:[%s1 + $0x78] sm:$0xff]
        %v383 = vld [vmem:[%s1 + $0x80] sm:$0xff]
        %v384 = vld [vmem:[%s1 + $0x88] sm:$0xff]
        %v385 = vld [vmem:[%s1 + $0x90] sm:$0xff]
        %v386 = vld [vmem:[%s1 + $0x98] sm:$0xff]
        %v387 = vld [vmem:[%s1 + $0xa0] sm:$0xff]
        %v388 = vld [vmem:[%s1 + $0xa8] sm:$0xff]
        %v389 = vld [vmem:[%s1 + $0xb0] sm:$0xff]
        %v390 = vld [vmem:[%s1 + $0xb8] sm:$0xff]
        %v391 = vld [vmem:[%s1 + $0xc0] sm:$0xff]
        %v392 = vld [vmem:[%s1 + $0xc8] sm:$0xff]
        %v393 = vld [vmem:[%s1 + $0xd0] sm:$0xff]
        %v394 = vld [vmem:[%s1 + $0xd8] sm:$0xff]
        %v395 = vld [vmem:[%s1 + $0xe0] sm:$0xff]
        %v396 = vld [vmem:[%s1 + $0xe8] sm:$0xff]
        %v397 = vld [vmem:[%s1 + $0xf0] sm:$0xff]
        %v398 = vld [vmem:[%s1 + $0xf8] sm:$0xff]
        %v399 = vld [vmem:[%s1 + $0x100] sm:$0xff]
        %v400 = vld [vmem:[%s1 + $0x108] sm:$0xff]
        %v401 = vld [vmem:[%s1 + $0x110] sm:$0xff]
        %v402 = vld [vmem:[%s1 + $0x118] sm:$0xff]
        %v403 = vld [vmem:[%s1 + $0x120] sm:$0xff]
        %v404 = vld [vmem:[%s1 + $0x128] sm:$0xff]
        %v405 = vld [vmem:[%s1 + $0x130] sm:$0xff]
        %v406 = vld [vmem:[%s1 + $0x138] sm:$0xff]
        %v407 = vld [vmem:[%s1 + $0x140] sm:$0xff]
        %v408 = vld [vmem:[%s1 + $0x148] sm:$0xff]
        %v409 = vld [vmem:[%s1 + $0x150] sm:$0xff]
        %v410 = vld [vmem:[%s1 + $0x158] sm:$0xff]
        %v411 = vld [vmem:[%s1 + $0x160] sm:$0xff]
        %v412 = vld [vmem:[%s1 + $0x168] sm:$0xff]
        %v413 = vld [vmem:[%s1 + $0x170] sm:$0xff]
        %v414 = vld [vmem:[%s1 + $0x178] sm:$0xff]
        %v415 = vld [vmem:[%s1 + $0x180] sm:$0xff]
        %v416 = vld [vmem:[%s1 + $0x188] sm:$0xff]
        %v417 = vld [vmem:[%s1 + $0x190] sm:$0xff]
        %v418 = vld [vmem:[%s1 + $0x198] sm:$0xff]
        %v419 = vld [vmem:[%s1 + $0x1a0] sm:$0xff]
        %v420 = vld [vmem:[%s1 + $0x1a8] sm:$0xff]
        %v421 = vld [vmem:[%s1 + $0x1b0] sm:$0xff]
        %v422 = vld [vmem:[%s1 + $0x1b8] sm:$0xff]
        %v423 = vld [vmem:[%s1 + $0x1c0] sm:$0xff]
        %v424 = vld [vmem:[%s1 + $0x1c8] sm:$0xff]
        %v425 = vld [vmem:[%s1 + $0x1d0] sm:$0xff]
        %v426 = vld [vmem:[%s1 + $0x1d8] sm:$0xff]
        %v427 = vld [vmem:[%s1 + $0x1e0] sm:$0xff]
        %v428 = vld [vmem:[%s1 + $0x1e8] sm:$0xff]
        %v429 = vld [vmem:[%s1 + $0x1f0] sm:$0xff]
        %v430 = vld [vmem:[%s1 + $0x1f8] sm:$0xff]
        %v431 = vld [vmem:[%s2] sm:$0x1]
        %v433 = vperm.slane %v431, 0
        %435 = vmatpush.msra.mxu0 %v382
        %436 = vmatpush.msra.mxu0 %v381
        %437 = vmatpush.msra.mxu0 %v380
        %438 = vmatpush.msra.mxu0 %v379
        %439 = vmatpush.msra.mxu0 %v378
        %440 = vmatpush.msra.mxu0 %v377
        %441 = vmatpush.msra.mxu0 %v376
        %442 = vmatpush.msra.mxu0 %v375
        %443 = vmatpush.msra.mxu0 %v374
        %444 = vmatpush.msra.mxu0 %v373
        %445 = vmatpush.msra.mxu0 %v372
        %446 = vmatpush.msra.mxu0 %v371
        %447 = vmatpush.msra.mxu0 %v370
        %448 = vmatpush.msra.mxu0 %v369
        %449 = vmatpush.msra.mxu0 %v368
        %450 = vmatpush.msra.mxu0 %v367
        %451 = vmatmul.f32.gmra.mxu0 %v303
        %v452 = vpop.f32.mrf.mxu0
        %v453 = vadd.f32 %v433, %v452
        %454 = vmatmul.f32.gmra.mxu0 %v307
        %v455 = vpop.f32.mrf.mxu0
        %v456 = vadd.f32 %v433, %v455
        %457 = vmatmul.f32.gmra.mxu0 %v311
        %v458 = vpop.f32.mrf.mxu0
        %v459 = vadd.f32 %v433, %v458
        %460 = vmatmul.f32.gmra.mxu0 %v315
        %v461 = vpop.f32.mrf.mxu0
        %v462 = vadd.f32 %v433, %v461
        %463 = vmatmul.f32.gmra.mxu0 %v319
        %v464 = vpop.f32.mrf.mxu0
        %v465 = vadd.f32 %v433, %v464
        %466 = vmatmul.f32.gmra.mxu0 %v323
        %v467 = vpop.f32.mrf.mxu0
        %v468 = vadd.f32 %v433, %v467
        %469 = vmatmul.f32.gmra.mxu0 %v327
        %v470 = vpop.f32.mrf.mxu0
        %v471 = vadd.f32 %v433, %v470
        %472 = vmatmul.f32.gmra.mxu0 %v331
        %v473 = vpop.f32.mrf.mxu0
        %v474 = vadd.f32 %v433, %v473
        %475 = vmatmul.f32.gmra.mxu0 %v335
        %v476 = vpop.f32.mrf.mxu0
        %v477 = vadd.f32 %v433, %v476
        %478 = vmatmul.f32.gmra.mxu0 %v339
        %v479 = vpop.f32.mrf.mxu0
        %v480 = vadd.f32 %v433, %v479
        %481 = vmatmul.f32.gmra.mxu0 %v343
        %v482 = vpop.f32.mrf.mxu0
        %v483 = vadd.f32 %v433, %v482
        %484 = vmatmul.f32.gmra.mxu0 %v347
        %v485 = vpop.f32.mrf.mxu0
        %v486 = vadd.f32 %v433, %v485
        %487 = vmatmul.f32.gmra.mxu0 %v351
        %v488 = vpop.f32.mrf.mxu0
        %v489 = vadd.f32 %v433, %v488
        %490 = vmatmul.f32.gmra.mxu0 %v355
        %v491 = vpop.f32.mrf.mxu0
        %v492 = vadd.f32 %v433, %v491
        %493 = vmatmul.f32.gmra.mxu0 %v359
        %v494 = vpop.f32.mrf.mxu0
        %v495 = vadd.f32 %v433, %v494
        %496 = vmatmul.f32.gmra.mxu0 %v363
        %v497 = vpop.f32.mrf.mxu0
        %v498 = vadd.f32 %v433, %v497
        %499 = vdwg.mxu0
        %500 = vmatpush.msra.mxu0 %v398
        %501 = vmatpush.msra.mxu0 %v397
        %502 = vmatpush.msra.mxu0 %v396
        %503 = vmatpush.msra.mxu0 %v395
        %504 = vmatpush.msra.mxu0 %v394
        %505 = vmatpush.msra.mxu0 %v393
        %506 = vmatpush.msra.mxu0 %v392
        %507 = vmatpush.msra.mxu0 %v391
        %508 = vmatpush.msra.mxu0 %v390
        %509 = vmatpush.msra.mxu0 %v389
        %510 = vmatpush.msra.mxu0 %v388
        %511 = vmatpush.msra.mxu0 %v387
        %512 = vmatpush.msra.mxu0 %v386
        %513 = vmatpush.msra.mxu0 %v385
        %514 = vmatpush.msra.mxu0 %v384
        %515 = vmatpush.msra.mxu0 %v383
        %516 = vmatmul.f32.gmra.mxu0 %v304
        %v517 = vpop.f32.mrf.mxu0
        %v518 = vadd.f32 %v453, %v517
        %519 = vmatmul.f32.gmra.mxu0 %v308
        %v520 = vpop.f32.mrf.mxu0
        %v521 = vadd.f32 %v456, %v520
        %522 = vmatmul.f32.gmra.mxu0 %v312
        %v523 = vpop.f32.mrf.mxu0
        %v524 = vadd.f32 %v459, %v523
        %525 = vmatmul.f32.gmra.mxu0 %v316
        %v526 = vpop.f32.mrf.mxu0
        %v527 = vadd.f32 %v462, %v526
        %528 = vmatmul.f32.gmra.mxu0 %v320
        %v529 = vpop.f32.mrf.mxu0
        %v530 = vadd.f32 %v465, %v529
        %531 = vmatmul.f32.gmra.mxu0 %v324
        %v532 = vpop.f32.mrf.mxu0
        %v533 = vadd.f32 %v468, %v532
        %534 = vmatmul.f32.gmra.mxu0 %v328
        %v535 = vpop.f32.mrf.mxu0
        %v536 = vadd.f32 %v471, %v535
        %537 = vmatmul.f32.gmra.mxu0 %v332
        %v538 = vpop.f32.mrf.mxu0
        %v539 = vadd.f32 %v474, %v538
        %540 = vmatmul.f32.gmra.mxu0 %v336
        %v541 = vpop.f32.mrf.mxu0
        %v542 = vadd.f32 %v477, %v541
        %543 = vmatmul.f32.gmra.mxu0 %v340
        %v544 = vpop.f32.mrf.mxu0
        %v545 = vadd.f32 %v480, %v544
        %546 = vmatmul.f32.gmra.mxu0 %v344
        %v547 = vpop.f32.mrf.mxu0
        %v548 = vadd.f32 %v483, %v547
        %549 = vmatmul.f32.gmra.mxu0 %v348
        %v550 = vpop.f32.mrf.mxu0
        %v551 = vadd.f32 %v486, %v550
        %552 = vmatmul.f32.gmra.mxu0 %v352
        %v553 = vpop.f32.mrf.mxu0
        %v554 = vadd.f32 %v489, %v553
        %555 = vmatmul.f32.gmra.mxu0 %v356
        %v556 = vpop.f32.mrf.mxu0
        %v557 = vadd.f32 %v492, %v556
        %558 = vmatmul.f32.gmra.mxu0 %v360
        %v559 = vpop.f32.mrf.mxu0
        %v560 = vadd.f32 %v495, %v559
        %561 = vmatmul.f32.gmra.mxu0 %v364
        %v562 = vpop.f32.mrf.mxu0
        %v563 = vadd.f32 %v498, %v562
        %564 = vdwg.mxu0
        %565 = vmatpush.msra.mxu0 %v414
        %566 = vmatpush.msra.mxu0 %v413
        %567 = vmatpush.msra.mxu0 %v412
        %568 = vmatpush.msra.mxu0 %v411
        %569 = vmatpush.msra.mxu0 %v410
        %570 = vmatpush.msra.mxu0 %v409
        %571 = vmatpush.msra.mxu0 %v408
        %572 = vmatpush.msra.mxu0 %v407
        %573 = vmatpush.msra.mxu0 %v406
        %574 = vmatpush.msra.mxu0 %v405
        %575 = vmatpush.msra.mxu0 %v404
        %576 = vmatpush.msra.mxu0 %v403
        %577 = vmatpush.msra.mxu0 %v402
        %578 = vmatpush.msra.mxu0 %v401
        %579 = vmatpush.msra.mxu0 %v400
        %580 = vmatpush.msra.mxu0 %v399
        %581 = vmatmul.f32.gmra.mxu0 %v305
        %v582 = vpop.f32.mrf.mxu0
        %v583 = vadd.f32 %v518, %v582
        %584 = vmatmul.f32.gmra.mxu0 %v309
        %v585 = vpop.f32.mrf.mxu0
        %v586 = vadd.f32 %v521, %v585
        %587 = vmatmul.f32.gmra.mxu0 %v313
        %v588 = vpop.f32.mrf.mxu0
        %v589 = vadd.f32 %v524, %v588
        %590 = vmatmul.f32.gmra.mxu0 %v317
        %v591 = vpop.f32.mrf.mxu0
        %v592 = vadd.f32 %v527, %v591
        %593 = vmatmul.f32.gmra.mxu0 %v321
        %v594 = vpop.f32.mrf.mxu0
        %v595 = vadd.f32 %v530, %v594
        %596 = vmatmul.f32.gmra.mxu0 %v325
        %v597 = vpop.f32.mrf.mxu0
        %v598 = vadd.f32 %v533, %v597
        %599 = vmatmul.f32.gmra.mxu0 %v329
        %v600 = vpop.f32.mrf.mxu0
        %v601 = vadd.f32 %v536, %v600
        %602 = vmatmul.f32.gmra.mxu0 %v333
        %v603 = vpop.f32.mrf.mxu0
        %v604 = vadd.f32 %v539, %v603
        %605 = vmatmul.f32.gmra.mxu0 %v337
        %v606 = vpop.f32.mrf.mxu0
        %v607 = vadd.f32 %v542, %v606
        %608 = vmatmul.f32.gmra.mxu0 %v341
        %v609 = vpop.f32.mrf.mxu0
        %v610 = vadd.f32 %v545, %v609
        %611 = vmatmul.f32.gmra.mxu0 %v345
        %v612 = vpop.f32.mrf.mxu0
        %v613 = vadd.f32 %v548, %v612
        %614 = vmatmul.f32.gmra.mxu0 %v349
        %v615 = vpop.f32.mrf.mxu0
        %v616 = vadd.f32 %v551, %v615
        %617 = vmatmul.f32.gmra.mxu0 %v353
        %v618 = vpop.f32.mrf.mxu0
        %v619 = vadd.f32 %v554, %v618
        %620 = vmatmul.f32.gmra.mxu0 %v357
        %v621 = vpop.f32.mrf.mxu0
        %v622 = vadd.f32 %v557, %v621
        %623 = vmatmul.f32.gmra.mxu0 %v361
        %v624 = vpop.f32.mrf.mxu0
        %v625 = vadd.f32 %v560, %v624
        %626 = vmatmul.f32.gmra.mxu0 %v365
        %v627 = vpop.f32.mrf.mxu0
        %v628 = vadd.f32 %v563, %v627
        %629 = vdwg.mxu0
        %630 = vmatpush.msra.mxu0 %v430
        %631 = vmatpush.msra.mxu0 %v429
        %632 = vmatpush.msra.mxu0 %v428
        %633 = vmatpush.msra.mxu0 %v427
        %634 = vmatpush.msra.mxu0 %v426
        %635 = vmatpush.msra.mxu0 %v425
        %636 = vmatpush.msra.mxu0 %v424
        %637 = vmatpush.msra.mxu0 %v423
        %638 = vmatpush.msra.mxu0 %v422
        %639 = vmatpush.msra.mxu0 %v421
        %640 = vmatpush.msra.mxu0 %v420
        %641 = vmatpush.msra.mxu0 %v419
        %642 = vmatpush.msra.mxu0 %v418
        %643 = vmatpush.msra.mxu0 %v417
        %644 = vmatpush.msra.mxu0 %v416
        %645 = vmatpush.msra.mxu0 %v415
        %646 = vmatmul.f32.gmra.mxu0 %v306
        %v647 = vpop.f32.mrf.mxu0
        %v648 = vadd.f32 %v583, %v647
        %649 = vmatmul.f32.gmra.mxu0 %v310
        %v650 = vpop.f32.mrf.mxu0
        %v651 = vadd.f32 %v586, %v650
        %652 = vmatmul.f32.gmra.mxu0 %v314
        %v653 = vpop.f32.mrf.mxu0
        %v654 = vadd.f32 %v589, %v653
        %655 = vmatmul.f32.gmra.mxu0 %v318
        %v656 = vpop.f32.mrf.mxu0
        %v657 = vadd.f32 %v592, %v656
        %658 = vmatmul.f32.gmra.mxu0 %v322
        %v659 = vpop.f32.mrf.mxu0
        %v660 = vadd.f32 %v595, %v659
        %661 = vmatmul.f32.gmra.mxu0 %v326
        %v662 = vpop.f32.mrf.mxu0
        %v663 = vadd.f32 %v598, %v662
        %664 = vmatmul.f32.gmra.mxu0 %v330
        %v665 = vpop.f32.mrf.mxu0
        %v666 = vadd.f32 %v601, %v665
        %667 = vmatmul.f32.gmra.mxu0 %v334
        %v668 = vpop.f32.mrf.mxu0
        %v669 = vadd.f32 %v604, %v668
        %670 = vmatmul.f32.gmra.mxu0 %v338
        %v671 = vpop.f32.mrf.mxu0
        %v672 = vadd.f32 %v607, %v671
        %673 = vmatmul.f32.gmra.mxu0 %v342
        %v674 = vpop.f32.mrf.mxu0
        %v675 = vadd.f32 %v610, %v674
        %676 = vmatmul.f32.gmra.mxu0 %v346
        %v677 = vpop.f32.mrf.mxu0
        %v678 = vadd.f32 %v613, %v677
        %679 = vmatmul.f32.gmra.mxu0 %v350
        %v680 = vpop.f32.mrf.mxu0
        %v681 = vadd.f32 %v616, %v680
        %682 = vmatmul.f32.gmra.mxu0 %v354
        %v683 = vpop.f32.mrf.mxu0
        %v684 = vadd.f32 %v619, %v683
        %685 = vmatmul.f32.gmra.mxu0 %v358
        %v686 = vpop.f32.mrf.mxu0
        %v687 = vadd.f32 %v622, %v686
        %688 = vmatmul.f32.gmra.mxu0 %v362
        %v689 = vpop.f32.mrf.mxu0
        %v690 = vadd.f32 %v625, %v689
        %691 = vmatmul.f32.gmra.mxu0 %v366
        %v692 = vpop.f32.mrf.mxu0
        %v693 = vadd.f32 %v628, %v692
        %694 = vdwg.mxu0
        %v695 = vtanh.pop %v648
        %v696 = vtanh.pop %v651
        %v697 = vtanh.pop %v654
        %v698 = vtanh.pop %v657
        %v699 = vtanh.pop %v660
        %v700 = vtanh.pop %v663
        %v701 = vtanh.pop %v666
        %v702 = vtanh.pop %v669
        %v703 = vtanh.pop %v672
        %v704 = vtanh.pop %v675
        %v705 = vtanh.pop %v678
        %v706 = vtanh.pop %v681
        %v707 = vtanh.pop %v684
        %v708 = vtanh.pop %v687
        %v709 = vtanh.pop %v690
        %v710 = vtanh.pop %v693
        %v711 = vxor.u32 %v648, 2147483648
        %v712 = vxor.u32 %v651, 2147483648
        %v713 = vxor.u32 %v654, 2147483648
        %v714 = vxor.u32 %v657, 2147483648
        %v715 = vxor.u32 %v660, 2147483648
        %v716 = vxor.u32 %v663, 2147483648
        %v717 = vxor.u32 %v666, 2147483648
        %v718 = vxor.u32 %v669, 2147483648
        %v719 = vxor.u32 %v672, 2147483648
        %v720 = vxor.u32 %v675, 2147483648
        %v721 = vxor.u32 %v678, 2147483648
        %v722 = vxor.u32 %v681, 2147483648
        %v723 = vxor.u32 %v684, 2147483648
        %v724 = vxor.u32 %v687, 2147483648
        %v725 = vxor.u32 %v690, 2147483648
        %v726 = vxor.u32 %v693, 2147483648
        %v727 = vmul.f32 %v711, 1.442695
        %v728 = vpow.pop %v727
        %v729 = vmul.f32 %v712, 1.442695
        %v730 = vpow.pop %v729
        %v731 = vmul.f32 %v713, 1.442695
        %v732 = vpow.pop %v731
        %v733 = vmul.f32 %v714, 1.442695
        %v734 = vpow.pop %v733
        %v735 = vmul.f32 %v715, 1.442695
        %v736 = vpow.pop %v735
        %v737 = vmul.f32 %v716, 1.442695
        %v738 = vpow.pop %v737
        %v739 = vmul.f32 %v717, 1.442695
        %v740 = vpow.pop %v739
        %v741 = vmul.f32 %v718, 1.442695
        %v742 = vpow.pop %v741
        %v743 = vmul.f32 %v719, 1.442695
        %v744 = vpow.pop %v743
        %v745 = vmul.f32 %v720, 1.442695
        %v746 = vpow.pop %v745
        %v747 = vmul.f32 %v721, 1.442695
        %v748 = vpow.pop %v747
        %v749 = vmul.f32 %v722, 1.442695
        %v750 = vpow.pop %v749
        %v751 = vmul.f32 %v723, 1.442695
        %v752 = vpow.pop %v751
        %v753 = vmul.f32 %v724, 1.442695
        %v754 = vpow.pop %v753
        %v755 = vmul.f32 %v725, 1.442695
        %v756 = vpow.pop %v755
        %v757 = vmul.f32 %v726, 1.442695
        %v758 = vpow.pop %v757
        %v759 = vadd.f32 %v728, 1.0
        %v760 = vadd.f32 %v730, 1.0
        %v761 = vadd.f32 %v732, 1.0
        %v762 = vadd.f32 %v734, 1.0
        %v763 = vadd.f32 %v736, 1.0
        %v764 = vadd.f32 %v738, 1.0
        %v765 = vadd.f32 %v740, 1.0
        %v766 = vadd.f32 %v742, 1.0
        %v767 = vadd.f32 %v744, 1.0
        %v768 = vadd.f32 %v746, 1.0
        %v769 = vadd.f32 %v748, 1.0
        %v770 = vadd.f32 %v750, 1.0
        %v771 = vadd.f32 %v752, 1.0
        %v772 = vadd.f32 %v754, 1.0
        %v773 = vadd.f32 %v756, 1.0
        %v774 = vadd.f32 %v758, 1.0
        %v775 = vrcp.pop %v759
        %v776 = vmul.f32 %v759, %v775
        %v777 = vsub.f32 1.0, %v776
        %v778 = vmul.f32 %v775, %v777
        %v779 = vadd.f32 %v775, %v778
        %vm780 = vweird.f32 %v759
        %vm781 = vweird.f32 %v775
        %vm782 = vmor %vm780, %vm781
        %v783 = vsel %vm782, %v775, %v779
        %v784 = vand.u32 2147483647, %v759
        %vm785 = vcmp.eq.f32.partialorder %v784, 8.507059e+37
        %v786 = vand.u32 %v759, 2147483648
        %v787 = vor.u32 1.1754944e-38, %v786
        %v788 = vsel %vm785, %v787, %v783
        %v789 = vmul.f32 1.0, %v788
        %v790 = vrcp.pop %v760
        %v791 = vmul.f32 %v760, %v790
        %v792 = vsub.f32 1.0, %v791
        %v793 = vmul.f32 %v790, %v792
        %v794 = vadd.f32 %v790, %v793
        %vm795 = vweird.f32 %v760
        %vm796 = vweird.f32 %v790
        %vm797 = vmor %vm795, %vm796
        %v798 = vsel %vm797, %v790, %v794
        %v799 = vand.u32 2147483647, %v760
        %vm800 = vcmp.eq.f32.partialorder %v799, 8.507059e+37
        %v801 = vand.u32 %v760, 2147483648
        %v802 = vor.u32 1.1754944e-38, %v801
        %v803 = vsel %vm800, %v802, %v798
        %v804 = vmul.f32 1.0, %v803
        %v805 = vrcp.pop %v761
        %v806 = vmul.f32 %v761, %v805
        %v807 = vsub.f32 1.0, %v806
        %v808 = vmul.f32 %v805, %v807
        %v809 = vadd.f32 %v805, %v808
        %vm810 = vweird.f32 %v761
        %vm811 = vweird.f32 %v805
        %vm812 = vmor %vm810, %vm811
        %v813 = vsel %vm812, %v805, %v809
        %v814 = vand.u32 2147483647, %v761
        %vm815 = vcmp.eq.f32.partialorder %v814, 8.507059e+37
        %v816 = vand.u32 %v761, 2147483648
        %v817 = vor.u32 1.1754944e-38, %v816
        %v818 = vsel %vm815, %v817, %v813
        %v819 = vmul.f32 1.0, %v818
        %v820 = vrcp.pop %v762
        %v821 = vmul.f32 %v762, %v820
        %v822 = vsub.f32 1.0, %v821
        %v823 = vmul.f32 %v820, %v822
        %v824 = vadd.f32 %v820, %v823
        %vm825 = vweird.f32 %v762
        %vm826 = vweird.f32 %v820
        %vm827 = vmor %vm825, %vm826
        %v828 = vsel %vm827, %v820, %v824
        %v829 = vand.u32 2147483647, %v762
        %vm830 = vcmp.eq.f32.partialorder %v829, 8.507059e+37
        %v831 = vand.u32 %v762, 2147483648
        %v832 = vor.u32 1.1754944e-38, %v831
        %v833 = vsel %vm830, %v832, %v828
        %v834 = vmul.f32 1.0, %v833
        %v835 = vrcp.pop %v763
        %v836 = vmul.f32 %v763, %v835
        %v837 = vsub.f32 1.0, %v836
        %v838 = vmul.f32 %v835, %v837
        %v839 = vadd.f32 %v835, %v838
        %vm840 = vweird.f32 %v763
        %vm841 = vweird.f32 %v835
        %vm842 = vmor %vm840, %vm841
        %v843 = vsel %vm842, %v835, %v839
        %v844 = vand.u32 2147483647, %v763
        %vm845 = vcmp.eq.f32.partialorder %v844, 8.507059e+37
        %v846 = vand.u32 %v763, 2147483648
        %v847 = vor.u32 1.1754944e-38, %v846
        %v848 = vsel %vm845, %v847, %v843
        %v849 = vmul.f32 1.0, %v848
        %v850 = vrcp.pop %v764
        %v851 = vmul.f32 %v764, %v850
        %v852 = vsub.f32 1.0, %v851
        %v853 = vmul.f32 %v850, %v852
        %v854 = vadd.f32 %v850, %v853
        %vm855 = vweird.f32 %v764
        %vm856 = vweird.f32 %v850
        %vm857 = vmor %vm855, %vm856
        %v858 = vsel %vm857, %v850, %v854
        %v859 = vand.u32 2147483647, %v764
        %vm860 = vcmp.eq.f32.partialorder %v859, 8.507059e+37
        %v861 = vand.u32 %v764, 2147483648
        %v862 = vor.u32 1.1754944e-38, %v861
        %v863 = vsel %vm860, %v862, %v858
        %v864 = vmul.f32 1.0, %v863
        %v865 = vrcp.pop %v765
        %v866 = vmul.f32 %v765, %v865
        %v867 = vsub.f32 1.0, %v866
        %v868 = vmul.f32 %v865, %v867
        %v869 = vadd.f32 %v865, %v868
        %vm870 = vweird.f32 %v765
        %vm871 = vweird.f32 %v865
        %vm872 = vmor %vm870, %vm871
        %v873 = vsel %vm872, %v865, %v869
        %v874 = vand.u32 2147483647, %v765
        %vm875 = vcmp.eq.f32.partialorder %v874, 8.507059e+37
        %v876 = vand.u32 %v765, 2147483648
        %v877 = vor.u32 1.1754944e-38, %v876
        %v878 = vsel %vm875, %v877, %v873
        %v879 = vmul.f32 1.0, %v878
        %v880 = vrcp.pop %v766
        %v881 = vmul.f32 %v766, %v880
        %v882 = vsub.f32 1.0, %v881
        %v883 = vmul.f32 %v880, %v882
        %v884 = vadd.f32 %v880, %v883
        %vm885 = vweird.f32 %v766
        %vm886 = vweird.f32 %v880
        %vm887 = vmor %vm885, %vm886
        %v888 = vsel %vm887, %v880, %v884
        %v889 = vand.u32 2147483647, %v766
        %vm890 = vcmp.eq.f32.partialorder %v889, 8.507059e+37
        %v891 = vand.u32 %v766, 2147483648
        %v892 = vor.u32 1.1754944e-38, %v891
        %v893 = vsel %vm890, %v892, %v888
        %v894 = vmul.f32 1.0, %v893
        %v895 = vrcp.pop %v767
        %v896 = vmul.f32 %v767, %v895
        %v897 = vsub.f32 1.0, %v896
        %v898 = vmul.f32 %v895, %v897
        %v899 = vadd.f32 %v895, %v898
        %vm900 = vweird.f32 %v767
        %vm901 = vweird.f32 %v895
        %vm902 = vmor %vm900, %vm901
        %v903 = vsel %vm902, %v895, %v899
        %v904 = vand.u32 2147483647, %v767
        %vm905 = vcmp.eq.f32.partialorder %v904, 8.507059e+37
        %v906 = vand.u32 %v767, 2147483648
        %v907 = vor.u32 1.1754944e-38, %v906
        %v908 = vsel %vm905, %v907, %v903
        %v909 = vmul.f32 1.0, %v908
        %v910 = vrcp.pop %v768
        %v911 = vmul.f32 %v768, %v910
        %v912 = vsub.f32 1.0, %v911
        %v913 = vmul.f32 %v910, %v912
        %v914 = vadd.f32 %v910, %v913
        %vm915 = vweird.f32 %v768
        %vm916 = vweird.f32 %v910
        %vm917 = vmor %vm915, %vm916
        %v918 = vsel %vm917, %v910, %v914
        %v919 = vand.u32 2147483647, %v768
        %vm920 = vcmp.eq.f32.partialorder %v919, 8.507059e+37
        %v921 = vand.u32 %v768, 2147483648
        %v922 = vor.u32 1.1754944e-38, %v921
        %v923 = vsel %vm920, %v922, %v918
        %v924 = vmul.f32 1.0, %v923
        %v925 = vrcp.pop %v769
        %v926 = vmul.f32 %v769, %v925
        %v927 = vsub.f32 1.0, %v926
        %v928 = vmul.f32 %v925, %v927
        %v929 = vadd.f32 %v925, %v928
        %vm930 = vweird.f32 %v769
        %vm931 = vweird.f32 %v925
        %vm932 = vmor %vm930, %vm931
        %v933 = vsel %vm932, %v925, %v929
        %v934 = vand.u32 2147483647, %v769
        %vm935 = vcmp.eq.f32.partialorder %v934, 8.507059e+37
        %v936 = vand.u32 %v769, 2147483648
        %v937 = vor.u32 1.1754944e-38, %v936
        %v938 = vsel %vm935, %v937, %v933
        %v939 = vmul.f32 1.0, %v938
        %v940 = vrcp.pop %v770
        %v941 = vmul.f32 %v770, %v940
        %v942 = vsub.f32 1.0, %v941
        %v943 = vmul.f32 %v940, %v942
        %v944 = vadd.f32 %v940, %v943
        %vm945 = vweird.f32 %v770
        %vm946 = vweird.f32 %v940
        %vm947 = vmor %vm945, %vm946
        %v948 = vsel %vm947, %v940, %v944
        %v949 = vand.u32 2147483647, %v770
        %vm950 = vcmp.eq.f32.partialorder %v949, 8.507059e+37
        %v951 = vand.u32 %v770, 2147483648
        %v952 = vor.u32 1.1754944e-38, %v951
        %v953 = vsel %vm950, %v952, %v948
        %v954 = vmul.f32 1.0, %v953
        %v955 = vrcp.pop %v771
        %v956 = vmul.f32 %v771, %v955
        %v957 = vsub.f32 1.0, %v956
        %v958 = vmul.f32 %v955, %v957
        %v959 = vadd.f32 %v955, %v958
        %vm960 = vweird.f32 %v771
        %vm961 = vweird.f32 %v955
        %vm962 = vmor %vm960, %vm961
        %v963 = vsel %vm962, %v955, %v959
        %v964 = vand.u32 2147483647, %v771
        %vm965 = vcmp.eq.f32.partialorder %v964, 8.507059e+37
        %v966 = vand.u32 %v771, 2147483648
        %v967 = vor.u32 1.1754944e-38, %v966
        %v968 = vsel %vm965, %v967, %v963
        %v969 = vmul.f32 1.0, %v968
        %v970 = vrcp.pop %v772
        %v971 = vmul.f32 %v772, %v970
        %v972 = vsub.f32 1.0, %v971
        %v973 = vmul.f32 %v970, %v972
        %v974 = vadd.f32 %v970, %v973
        %vm975 = vweird.f32 %v772
        %vm976 = vweird.f32 %v970
        %vm977 = vmor %vm975, %vm976
        %v978 = vsel %vm977, %v970, %v974
        %v979 = vand.u32 2147483647, %v772
        %vm980 = vcmp.eq.f32.partialorder %v979, 8.507059e+37
        %v981 = vand.u32 %v772, 2147483648
        %v982 = vor.u32 1.1754944e-38, %v981
        %v983 = vsel %vm980, %v982, %v978
        %v984 = vmul.f32 1.0, %v983
        %v985 = vrcp.pop %v773
        %v986 = vmul.f32 %v773, %v985
        %v987 = vsub.f32 1.0, %v986
        %v988 = vmul.f32 %v985, %v987
        %v989 = vadd.f32 %v985, %v988
        %vm990 = vweird.f32 %v773
        %vm991 = vweird.f32 %v985
        %vm992 = vmor %vm990, %vm991
        %v993 = vsel %vm992, %v985, %v989
        %v994 = vand.u32 2147483647, %v773
        %vm995 = vcmp.eq.f32.partialorder %v994, 8.507059e+37
        %v996 = vand.u32 %v773, 2147483648
        %v997 = vor.u32 1.1754944e-38, %v996
        %v998 = vsel %vm995, %v997, %v993
        %v999 = vmul.f32 1.0, %v998
        %v1000 = vrcp.pop %v774
        %v1001 = vmul.f32 %v774, %v1000
        %v1002 = vsub.f32 1.0, %v1001
        %v1003 = vmul.f32 %v1000, %v1002
        %v1004 = vadd.f32 %v1000, %v1003
        %vm1005 = vweird.f32 %v774
        %vm1006 = vweird.f32 %v1000
        %vm1007 = vmor %vm1005, %vm1006
        %v1008 = vsel %vm1007, %v1000, %v1004
        %v1009 = vand.u32 2147483647, %v774
        %vm1010 = vcmp.eq.f32.partialorder %v1009, 8.507059e+37
        %v1011 = vand.u32 %v774, 2147483648
        %v1012 = vor.u32 1.1754944e-38, %v1011
        %v1013 = vsel %vm1010, %v1012, %v1008
        %v1014 = vmul.f32 1.0, %v1013
        %1031 = vrot.lane.b32.xlu0 %v789, 96
        %v1032 = vpop.permute.xlu0 %1031
        %1033 = vrot.lane.b32.xlu0 %v804, 96
        %v1034 = vpop.permute.xlu0 %1033
        %1035 = vrot.lane.b32.xlu0 %v819, 96
        %v1036 = vpop.permute.xlu0 %1035
        %1037 = vrot.lane.b32.xlu0 %v834, 96
        %v1038 = vpop.permute.xlu0 %1037
        %1039 = vrot.lane.b32.xlu0 %v849, 96
        %v1040 = vpop.permute.xlu0 %1039
        %1041 = vrot.lane.b32.xlu0 %v864, 96
        %v1042 = vpop.permute.xlu0 %1041
        %1043 = vrot.lane.b32.xlu0 %v879, 96
        %v1044 = vpop.permute.xlu0 %1043
        %1045 = vrot.lane.b32.xlu0 %v894, 96
        %v1046 = vpop.permute.xlu0 %1045
        %1047 = vrot.lane.b32.xlu0 %v909, 96
        %v1048 = vpop.permute.xlu0 %1047
        %1049 = vrot.lane.b32.xlu0 %v924, 96
        %v1050 = vpop.permute.xlu0 %1049
        %1051 = vrot.lane.b32.xlu0 %v939, 96
        %v1052 = vpop.permute.xlu0 %1051
        %1053 = vrot.lane.b32.xlu0 %v954, 96
        %v1054 = vpop.permute.xlu0 %1053
        %1055 = vrot.lane.b32.xlu0 %v969, 96
        %v1056 = vpop.permute.xlu0 %1055
        %1057 = vrot.lane.b32.xlu0 %v984, 96
        %v1058 = vpop.permute.xlu0 %1057
        %1059 = vrot.lane.b32.xlu0 %v999, 96
        %v1060 = vpop.permute.xlu0 %1059
        %1061 = vrot.lane.b32.xlu0 %v1014, 96
        %v1062 = vpop.permute.xlu0 %1061
        %v1079 = vmul.f32 %v695, %v1032
        %v1080 = vmul.f32 %v696, %v1034
        %v1081 = vmul.f32 %v697, %v1036
        %v1082 = vmul.f32 %v698, %v1038
        %v1083 = vmul.f32 %v699, %v1040
        %v1084 = vmul.f32 %v700, %v1042
        %v1085 = vmul.f32 %v701, %v1044
        %v1086 = vmul.f32 %v702, %v1046
        %v1087 = vmul.f32 %v703, %v1048
        %v1088 = vmul.f32 %v704, %v1050
        %v1089 = vmul.f32 %v705, %v1052
        %v1090 = vmul.f32 %v706, %v1054
        %v1091 = vmul.f32 %v707, %v1056
        %v1092 = vmul.f32 %v708, %v1058
        %v1093 = vmul.f32 %v709, %v1060
        %v1094 = vmul.f32 %v710, %v1062
        %v1095 = vld [vmem:[%s3] sm:$0xff]
        %v1096 = vld [vmem:[%s3 + $0x8] sm:$0xff]
        %v1097 = vld [vmem:[%s3 + $0x10] sm:$0xff]
        %v1098 = vld [vmem:[%s3 + $0x18] sm:$0xff]
        %v1099 = vld [vmem:[#allocation5] sm:$0x1]
        %1101 = vset.pattern.permute.xlu0 0
        %1102 = vperm.xlu0 %1101, %v1099
        %v1103 = vpop.permute.xlu0 %1102
        %v1105 = vperm.slane %v1103, 0
        %1106 = vxpose.xlu0.b32.start [1/16] %v1095, 128
        %1107 = vxpose.xlu0.b32.cont [2/16] %v1096, 128
        %1108 = vxpose.xlu0.b32.cont [3/16] %v1097, 128
        %1109 = vxpose.xlu0.b32.cont [4/16] %v1098, 128
        %1110 = vxpose.xlu0.b32.cont [5/16] 0.0, 128
        %1111 = vxpose.xlu0.b32.cont [6/16] 0.0, 128
        %1112 = vxpose.xlu0.b32.cont [7/16] 0.0, 128
        %1113 = vxpose.xlu0.b32.cont [8/16] 0.0, 128
        %1114 = vxpose.xlu0.b32.cont [9/16] 0.0, 128
        %1115 = vxpose.xlu0.b32.cont [10/16] 0.0, 128
        %1116 = vxpose.xlu0.b32.cont [11/16] 0.0, 128
        %1117 = vxpose.xlu0.b32.cont [12/16] 0.0, 128
        %1118 = vxpose.xlu0.b32.cont [13/16] 0.0, 128
        %1119 = vxpose.xlu0.b32.cont [14/16] 0.0, 128
        %1120 = vxpose.xlu0.b32.cont [15/16] 0.0, 128
        %1121 = vxpose.xlu0.b32.end [16/16] 0.0, 128
        %v1122 = vpop.trf.xlu0
        %v1123 = vpop.trf.xlu0
        %v1124 = vpop.trf.xlu0
        %v1125 = vpop.trf.xlu0
        %v1126 = vpop.trf.xlu0
        %v1127 = vpop.trf.xlu0
        %v1128 = vpop.trf.xlu0
        %v1129 = vpop.trf.xlu0
        %v1130 = vpop.trf.xlu0
        %v1131 = vpop.trf.xlu0
        %v1132 = vpop.trf.xlu0
        %v1133 = vpop.trf.xlu0
        %v1134 = vpop.trf.xlu0
        %v1135 = vpop.trf.xlu0
        %v1136 = vpop.trf.xlu0
        %v1137 = vpop.trf.xlu0
        %vm1138 = vcmask 261120
        %v1140 = vsel %vm1138, %v1122, 0
        %v1143 = vsel %vm1138, %v1079, 0
        %v1146 = vsel %vm1138, %v1080, 0
        %v1149 = vsel %vm1138, %v1081, 0
        %v1152 = vsel %vm1138, %v1082, 0
        %v1155 = vsel %vm1138, %v1083, 0
        %v1158 = vsel %vm1138, %v1084, 0
        %v1161 = vsel %vm1138, %v1085, 0
        %v1164 = vsel %vm1138, %v1086, 0
        %v1167 = vsel %vm1138, %v1087, 0
        %v1170 = vsel %vm1138, %v1088, 0
        %v1173 = vsel %vm1138, %v1089, 0
        %v1176 = vsel %vm1138, %v1090, 0
        %v1179 = vsel %vm1138, %v1091, 0
        %v1182 = vsel %vm1138, %v1092, 0
        %v1185 = vsel %vm1138, %v1093, 0
        %v1188 = vsel %vm1138, %v1094, 0
        %1190 = vmatpush.xpose.msra.mxu0 %v1188
        %1191 = vmatpush.xpose.msra.mxu0 %v1185
        %1192 = vmatpush.xpose.msra.mxu0 %v1182
        %1193 = vmatpush.xpose.msra.mxu0 %v1179
        %1194 = vmatpush.xpose.msra.mxu0 %v1176
        %1195 = vmatpush.xpose.msra.mxu0 %v1173
        %1196 = vmatpush.xpose.msra.mxu0 %v1170
        %1197 = vmatpush.xpose.msra.mxu0 %v1167
        %1198 = vmatpush.xpose.msra.mxu0 %v1164
        %1199 = vmatpush.xpose.msra.mxu0 %v1161
        %1200 = vmatpush.xpose.msra.mxu0 %v1158
        %1201 = vmatpush.xpose.msra.mxu0 %v1155
        %1202 = vmatpush.xpose.msra.mxu0 %v1152
        %1203 = vmatpush.xpose.msra.mxu0 %v1149
        %1204 = vmatpush.xpose.msra.mxu0 %v1146
        %1205 = vmatpush.xpose.msra.mxu0 %v1143
        %1206 = vmatmul.f32.gmra.mxu0 %v1140
        %v1207 = vpop.f32.mrf.mxu0
        %v1208 = vadd.f32 %v1105, %v1207
        %1209 = vdwg.mxu0
        %v1210 = vlaneseq
        %v1211 = vand.u32 %v1210, 127
        %s1212 = smul.u32 %s24, 128
        %v1213 = vstv %s1212
        %v1214 = vadd.s32 %v1211, %v1213
        %vm1215 = vcmp.lt.s32.totalorder %v1214, 300
        %v1216 = vsel %vm1215, %v1208, -1e+30
        %v1217 = vld [vmem:[#allocation2] sm:$0x1]
        %vm1218 = vcmask 1040384
        %v1219 = vsel %vm1218, %v1216, -inf
        %1220 = vmax.xlane.f32.xlu0 %v1219
        %v1221 = vpop.xlane.xlu0 %1220
        %v1222 = vmax.f32 %v1217, %v1221
        %v1223 = vsub.f32 %v1217, %v1222
        %v1224 = vmul.f32 %v1223, 1.442695
        %v1225 = vpow.pop %v1224
        %1227 = vset.pattern.permute.xlu0 0
        %1228 = vperm.xlu0 %1227, %v1222
        %v1229 = vpop.permute.xlu0 %1228
        %v1231 = vperm.slane %v1229, 0
        %v1232 = vsub.f32 %v1216, %v1231
        %v1233 = vmul.f32 %v1232, 1.442695
        %v1234 = vpow.pop %v1233
        %v1235 = vld [vmem:[#allocation3] sm:$0x1]
        %v1236 = vmul.f32 %v1225, %v1235
        %v1237 = vsel %vm1218, %v1234, 0.0
        %1238 = vadd.xlane.f32.xlu0 %v1237
        %v1239 = vpop.xlane.xlu0 %1238
        %v1240 = vadd.f32 %v1236, %v1239
        %vm1241 = vcmask 0
        %1242 = vst.msk [vmem:[#allocation3] sm:$0x1] %vm1241, %v1240
        %v1243 = vld [vmem:[#allocation4] sm:$0xf]
        %1245 = vset.pattern.permute.xlu0 0
        %1246 = vperm.xlu0 %1245, %v1225
        %v1247 = vpop.permute.xlu0 %1246
        %v1249 = vperm.slane %v1247, 0
        %v1250 = vmul.f32 %v1249, %v1243
        %1251 = vmatpush.msra.mxu0 %v363
        %1252 = vmatpush.msra.mxu0 %v359
        %1253 = vmatpush.msra.mxu0 %v355
        %1254 = vmatpush.msra.mxu0 %v351
        %1255 = vmatpush.msra.mxu0 %v347
        %1256 = vmatpush.msra.mxu0 %v343
        %1257 = vmatpush.msra.mxu0 %v339
        %1258 = vmatpush.msra.mxu0 %v335
        %1259 = vmatpush.msra.mxu0 %v331
        %1260 = vmatpush.msra.mxu0 %v327
        %1261 = vmatpush.msra.mxu0 %v323
        %1262 = vmatpush.msra.mxu0 %v319
        %1263 = vmatpush.msra.mxu0 %v315
        %1264 = vmatpush.msra.mxu0 %v311
        %1265 = vmatpush.msra.mxu0 %v307
        %1266 = vmatpush.msra.mxu0 %v303
        %1267 = vmatmul.f32.gmra.mxu0 %v1234
        %v1268 = vpop.f32.mrf.mxu0
        %v1269 = vadd.f32 0.0, %v1268
        %1270 = vdwg.mxu0
        %1271 = vmatpush.msra.mxu0 %v364
        %1272 = vmatpush.msra.mxu0 %v360
        %1273 = vmatpush.msra.mxu0 %v356
        %1274 = vmatpush.msra.mxu0 %v352
        %1275 = vmatpush.msra.mxu0 %v348
        %1276 = vmatpush.msra.mxu0 %v344
        %1277 = vmatpush.msra.mxu0 %v340
        %1278 = vmatpush.msra.mxu0 %v336
        %1279 = vmatpush.msra.mxu0 %v332
        %1280 = vmatpush.msra.mxu0 %v328
        %1281 = vmatpush.msra.mxu0 %v324
        %1282 = vmatpush.msra.mxu0 %v320
        %1283 = vmatpush.msra.mxu0 %v316
        %1284 = vmatpush.msra.mxu0 %v312
        %1285 = vmatpush.msra.mxu0 %v308
        %1286 = vmatpush.msra.mxu0 %v304
        %1287 = vmatmul.f32.gmra.mxu0 %v1234
        %v1288 = vpop.f32.mrf.mxu0
        %v1289 = vadd.f32 0.0, %v1288
        %1290 = vdwg.mxu0
        %1291 = vmatpush.msra.mxu0 %v365
        %1292 = vmatpush.msra.mxu0 %v361
        %1293 = vmatpush.msra.mxu0 %v357
        %1294 = vmatpush.msra.mxu0 %v353
        %1295 = vmatpush.msra.mxu0 %v349
        %1296 = vmatpush.msra.mxu0 %v345
        %1297 = vmatpush.msra.mxu0 %v341
        %1298 = vmatpush.msra.mxu0 %v337
        %1299 = vmatpush.msra.mxu0 %v333
        %1300 = vmatpush.msra.mxu0 %v329
        %1301 = vmatpush.msra.mxu0 %v325
        %1302 = vmatpush.msra.mxu0 %v321
        %1303 = vmatpush.msra.mxu0 %v317
        %1304 = vmatpush.msra.mxu0 %v313
        %1305 = vmatpush.msra.mxu0 %v309
        %1306 = vmatpush.msra.mxu0 %v305
        %1307 = vmatmul.f32.gmra.mxu0 %v1234
        %v1308 = vpop.f32.mrf.mxu0
        %v1309 = vadd.f32 0.0, %v1308
        %1310 = vdwg.mxu0
        %1311 = vmatpush.msra.mxu0 %v366
        %1312 = vmatpush.msra.mxu0 %v362
        %1313 = vmatpush.msra.mxu0 %v358
        %1314 = vmatpush.msra.mxu0 %v354
        %1315 = vmatpush.msra.mxu0 %v350
        %1316 = vmatpush.msra.mxu0 %v346
        %1317 = vmatpush.msra.mxu0 %v342
        %1318 = vmatpush.msra.mxu0 %v338
        %1319 = vmatpush.msra.mxu0 %v334
        %1320 = vmatpush.msra.mxu0 %v330
        %1321 = vmatpush.msra.mxu0 %v326
        %1322 = vmatpush.msra.mxu0 %v322
        %1323 = vmatpush.msra.mxu0 %v318
        %1324 = vmatpush.msra.mxu0 %v314
        %1325 = vmatpush.msra.mxu0 %v310
        %1326 = vmatpush.msra.mxu0 %v306
        %1327 = vmatmul.f32.gmra.mxu0 %v1234
        %v1328 = vpop.f32.mrf.mxu0
        %v1329 = vadd.f32 0.0, %v1328
        %1330 = vdwg.mxu0
        %v1335 = vrot.slane %v1289, 7
        %v1336 = vrot.slane %v1309, 6
        %v1337 = vrot.slane %v1329, 5
        %v1338 = vsel %vm1218, %v1269, %v1335
        %vm1339 = vcmask 1042434
        %v1340 = vsel %vm1339, %v1336, %v1337
        %vm1341 = vcmask 1041408
        %v1342 = vsel %vm1341, %v1338, %v1340
        %v1344 = vadd.f32 %v1250, %v1342
        %v1345 = vlaneseq
        %vm1346 = vcmp.ge.s32.totalorder %v1345, 0
        %vm1347 = vcmp.lt.s32.totalorder %v1345, 512
        %vm1348 = vmand %vm1346, %vm1347
        %1349 = vst.msk [vmem:[#allocation4] sm:$0xf] %vm1348, %v1344
        %1350 = vst.msk [vmem:[#allocation2] sm:$0x1] %vm1241, %v1222
        %p1351 = scmp.eq.s32.totalorder %s24, 2
        // Predicated region
        $region57: #{tpu_custom_call.1} parent=47 // pred_check
          %p1352 = pneg %p1351
        $region58: #{tpu_custom_call.1} parent=47 // pred_check_branch
          %1354 = sbr.rel (%p1352) target = $region60
        $region59: #{tpu_custom_call.1} parent=47 // pred_region
          %v1355 = vld [vmem:[#allocation3] sm:$0x1]
          %v1356 = vrcp.pop %v1355
          %v1357 = vld [vmem:[#allocation4] sm:$0xf]
          %1359 = vset.pattern.permute.xlu0 0
          %1360 = vperm.xlu0 %1359, %v1356
          %v1361 = vpop.permute.xlu0 %1360
          %v1363 = vperm.slane %v1361, 0
          %v1364 = vmul.f32 %v1357, %v1363
          %v1365 = vld [vmem:[%s5] sm:$0xff]
          %v1366 = vld [vmem:[%s5 + $0x8] sm:$0xff]
          %v1367 = vld [vmem:[%s5 + $0x10] sm:$0xff]
          %v1368 = vld [vmem:[%s5 + $0x18] sm:$0xff]
          %v1369 = vld [vmem:[%s5 + $0x20] sm:$0xff]
          %v1370 = vld [vmem:[%s5 + $0x28] sm:$0xff]
          %v1371 = vld [vmem:[%s5 + $0x30] sm:$0xff]
          %v1372 = vld [vmem:[%s5 + $0x38] sm:$0xff]
          %v1373 = vld [vmem:[%s5 + $0x40] sm:$0xff]
          %v1374 = vld [vmem:[%s5 + $0x48] sm:$0xff]
          %v1375 = vld [vmem:[%s5 + $0x50] sm:$0xff]
          %v1376 = vld [vmem:[%s5 + $0x58] sm:$0xff]
          %v1377 = vld [vmem:[%s5 + $0x60] sm:$0xff]
          %v1378 = vld [vmem:[%s5 + $0x68] sm:$0xff]
          %v1379 = vld [vmem:[%s5 + $0x70] sm:$0xff]
          %v1380 = vld [vmem:[%s5 + $0x78] sm:$0xff]
          %v1381 = vld [vmem:[%s5 + $0x80] sm:$0xff]
          %v1382 = vld [vmem:[%s5 + $0x88] sm:$0xff]
          %v1383 = vld [vmem:[%s5 + $0x90] sm:$0xff]
          %v1384 = vld [vmem:[%s5 + $0x98] sm:$0xff]
          %v1385 = vld [vmem:[%s5 + $0xa0] sm:$0xff]
          %v1386 = vld [vmem:[%s5 + $0xa8] sm:$0xff]
          %v1387 = vld [vmem:[%s5 + $0xb0] sm:$0xff]
          %v1388 = vld [vmem:[%s5 + $0xb8] sm:$0xff]
          %v1389 = vld [vmem:[%s5 + $0xc0] sm:$0xff]
          %v1390 = vld [vmem:[%s5 + $0xc8] sm:$0xff]
          %v1391 = vld [vmem:[%s5 + $0xd0] sm:$0xff]
          %v1392 = vld [vmem:[%s5 + $0xd8] sm:$0xff]
          %v1393 = vld [vmem:[%s5 + $0xe0] sm:$0xff]
          %v1394 = vld [vmem:[%s5 + $0xe8] sm:$0xff]
          %v1395 = vld [vmem:[%s5 + $0xf0] sm:$0xff]
          %v1396 = vld [vmem:[%s5 + $0xf8] sm:$0xff]
          %v1397 = vld [vmem:[%s5 + $0x100] sm:$0xff]
          %v1398 = vld [vmem:[%s5 + $0x108] sm:$0xff]
          %v1399 = vld [vmem:[%s5 + $0x110] sm:$0xff]
          %v1400 = vld [vmem:[%s5 + $0x118] sm:$0xff]
          %v1401 = vld [vmem:[%s5 + $0x120] sm:$0xff]
          %v1402 = vld [vmem:[%s5 + $0x128] sm:$0xff]
          %v1403 = vld [vmem:[%s5 + $0x130] sm:$0xff]
          %v1404 = vld [vmem:[%s5 + $0x138] sm:$0xff]
          %v1405 = vld [vmem:[%s5 + $0x140] sm:$0xff]
          %v1406 = vld [vmem:[%s5 + $0x148] sm:$0xff]
          %v1407 = vld [vmem:[%s5 + $0x150] sm:$0xff]
          %v1408 = vld [vmem:[%s5 + $0x158] sm:$0xff]
          %v1409 = vld [vmem:[%s5 + $0x160] sm:$0xff]
          %v1410 = vld [vmem:[%s5 + $0x168] sm:$0xff]
          %v1411 = vld [vmem:[%s5 + $0x170] sm:$0xff]
          %v1412 = vld [vmem:[%s5 + $0x178] sm:$0xff]
          %v1413 = vld [vmem:[%s5 + $0x180] sm:$0xff]
          %v1414 = vld [vmem:[%s5 + $0x188] sm:$0xff]
          %v1415 = vld [vmem:[%s5 + $0x190] sm:$0xff]
          %v1416 = vld [vmem:[%s5 + $0x198] sm:$0xff]
          %v1417 = vld [vmem:[%s5 + $0x1a0] sm:$0xff]
          %v1418 = vld [vmem:[%s5 + $0x1a8] sm:$0xff]
          %v1419 = vld [vmem:[%s5 + $0x1b0] sm:$0xff]
          %v1420 = vld [vmem:[%s5 + $0x1b8] sm:$0xff]
          %v1421 = vld [vmem:[%s5 + $0x1c0] sm:$0xff]
          %v1422 = vld [vmem:[%s5 + $0x1c8] sm:$0xff]
          %v1423 = vld [vmem:[%s5 + $0x1d0] sm:$0xff]
          %v1424 = vld [vmem:[%s5 + $0x1d8] sm:$0xff]
          %v1425 = vld [vmem:[%s5 + $0x1e0] sm:$0xff]
          %v1426 = vld [vmem:[%s5 + $0x1e8] sm:$0xff]
          %v1427 = vld [vmem:[%s5 + $0x1f0] sm:$0xff]
          %v1428 = vld [vmem:[%s5 + $0x1f8] sm:$0xff]
          %v1429 = vld [vmem:[%s6] sm:$0x1]
          %v1431 = vperm.slane %v1364, 0
          %v1432 = vperm.slane %v1364, 1
          %v1433 = vperm.slane %v1364, 2
          %v1434 = vperm.slane %v1364, 3
          %1439 = vmatpush.msra.mxu0 %v1380
          %1440 = vmatpush.msra.mxu0 %v1379
          %1441 = vmatpush.msra.mxu0 %v1378
          %1442 = vmatpush.msra.mxu0 %v1377
          %1443 = vmatpush.msra.mxu0 %v1376
          %1444 = vmatpush.msra.mxu0 %v1375
          %1445 = vmatpush.msra.mxu0 %v1374
          %1446 = vmatpush.msra.mxu0 %v1373
          %1447 = vmatpush.msra.mxu0 %v1372
          %1448 = vmatpush.msra.mxu0 %v1371
          %1449 = vmatpush.msra.mxu0 %v1370
          %1450 = vmatpush.msra.mxu0 %v1369
          %1451 = vmatpush.msra.mxu0 %v1368
          %1452 = vmatpush.msra.mxu0 %v1367
          %1453 = vmatpush.msra.mxu0 %v1366
          %1454 = vmatpush.msra.mxu0 %v1365
          %1455 = vmatmul.f32.gmra.mxu0 %v1431
          %v1456 = vpop.f32.mrf.mxu0
          %v1457 = vadd.f32 %v1429, %v1456
          %1458 = vdwg.mxu0
          %1459 = vmatpush.msra.mxu0 %v1396
          %1460 = vmatpush.msra.mxu0 %v1395
          %1461 = vmatpush.msra.mxu0 %v1394
          %1462 = vmatpush.msra.mxu0 %v1393
          %1463 = vmatpush.msra.mxu0 %v1392
          %1464 = vmatpush.msra.mxu0 %v1391
          %1465 = vmatpush.msra.mxu0 %v1390
          %1466 = vmatpush.msra.mxu0 %v1389
          %1467 = vmatpush.msra.mxu0 %v1388
          %1468 = vmatpush.msra.mxu0 %v1387
          %1469 = vmatpush.msra.mxu0 %v1386
          %1470 = vmatpush.msra.mxu0 %v1385
          %1471 = vmatpush.msra.mxu0 %v1384
          %1472 = vmatpush.msra.mxu0 %v1383
          %1473 = vmatpush.msra.mxu0 %v1382
          %1474 = vmatpush.msra.mxu0 %v1381
          %1475 = vmatmul.f32.gmra.mxu0 %v1432
          %v1476 = vpop.f32.mrf.mxu0
          %v1477 = vadd.f32 %v1457, %v1476
          %1478 = vdwg.mxu0
          %1479 = vmatpush.msra.mxu0 %v1412
          %1480 = vmatpush.msra.mxu0 %v1411
          %1481 = vmatpush.msra.mxu0 %v1410
          %1482 = vmatpush.msra.mxu0 %v1409
          %1483 = vmatpush.msra.mxu0 %v1408
          %1484 = vmatpush.msra.mxu0 %v1407
          %1485 = vmatpush.msra.mxu0 %v1406
          %1486 = vmatpush.msra.mxu0 %v1405
          %1487 = vmatpush.msra.mxu0 %v1404
          %1488 = vmatpush.msra.mxu0 %v1403
          %1489 = vmatpush.msra.mxu0 %v1402
          %1490 = vmatpush.msra.mxu0 %v1401
          %1491 = vmatpush.msra.mxu0 %v1400
          %1492 = vmatpush.msra.mxu0 %v1399
          %1493 = vmatpush.msra.mxu0 %v1398
          %1494 = vmatpush.msra.mxu0 %v1397
          %1495 = vmatmul.f32.gmra.mxu0 %v1433
          %v1496 = vpop.f32.mrf.mxu0
          %v1497 = vadd.f32 %v1477, %v1496
          %1498 = vdwg.mxu0
          %1499 = vmatpush.msra.mxu0 %v1428
          %1500 = vmatpush.msra.mxu0 %v1427
          %1501 = vmatpush.msra.mxu0 %v1426
          %1502 = vmatpush.msra.mxu0 %v1425
          %1503 = vmatpush.msra.mxu0 %v1424
          %1504 = vmatpush.msra.mxu0 %v1423
          %1505 = vmatpush.msra.mxu0 %v1422
          %1506 = vmatpush.msra.mxu0 %v1421
          %1507 = vmatpush.msra.mxu0 %v1420
          %1508 = vmatpush.msra.mxu0 %v1419
          %1509 = vmatpush.msra.mxu0 %v1418
          %1510 = vmatpush.msra.mxu0 %v1417
          %1511 = vmatpush.msra.mxu0 %v1416
          %1512 = vmatpush.msra.mxu0 %v1415
          %1513 = vmatpush.msra.mxu0 %v1414
          %1514 = vmatpush.msra.mxu0 %v1413
          %1515 = vmatmul.f32.gmra.mxu0 %v1434
          %v1516 = vpop.f32.mrf.mxu0
          %v1517 = vadd.f32 %v1497, %v1516
          %1518 = vdwg.mxu0
          %vm1519 = vcmask 8192
          %1520 = vst.msk [vmem:[#allocation9] sm:$0x1] %vm1519, %v1517
        $region60: #{tpu_custom_call.1} parent=47 // pred_fallthru
          _
        // Predicated region
        $region61: #{tpu_custom_call.1} parent=47 // pred_check
          %p1521 = pneg %p189
        $region62: #{tpu_custom_call.1} parent=47 // pred_check_branch
          %1523 = sbr.rel (%p1521) target = $region64
        $region63: #{tpu_custom_call.1} parent=47 // pred_region
          %1525 = vsyncadd [#allocation8], 0
          %s1527 = sshll.u32 [#allocation9], 4
          %s1528 = int_to_ptr.vmem [resolvable:$true] %s1527
          %s1529 = sshll.u32 %s7, 4
          %s1530 = int_to_ptr.hbm [resolvable:$true] %s1529
          %1532 = dma.vmem_to_hbm [thread:$0]  %s1528, 16, %s1530, [#allocation8]
        $region64: #{tpu_custom_call.1} parent=47 // pred_fallthru
          _
        // Predicated region
        $region65: #{tpu_custom_call.1} parent=47 // pred_check
          %p1533 = pneg %p189
        $region66: #{tpu_custom_call.1} parent=47 // pred_check_branch
          %1535 = sbr.rel (%p1533) target = $region68
        $region67: #{tpu_custom_call.1} parent=47 // pred_region
          %1537 = dma.done [#allocation8], 16
        $region68: #{tpu_custom_call.1} parent=47 // pred_fallthru
          _
      $region48: #{tpu_custom_call.1} parent=5 // pred_fallthru
        _
      %p1538 = scmp.le.s32.totalorder 2, %s19
      // Predicated region
      $region69: #{tpu_custom_call.1} parent=5 // pred_check
        %p1539 = pneg %p1538
      $region70: #{tpu_custom_call.1} parent=5 // pred_check_branch
        %1541 = sbr.rel (%p1539) target = $region72
      $region71: #{tpu_custom_call.1} parent=5 // pred_region
        %s1542 = ssub.s32 %s19, 2
      $region72: #{tpu_custom_call.1} parent=5 // pred_fallthru
        _
    $region6: #{tpu_custom_call.1} parent=1 // loop_footer
      %s23 = sadd.s32 1, %s19
    $region7: #{tpu_custom_call.1} parent=1 // loop_footer_branch
      %18 = sbr.rel target = $region3
    $region8: #{tpu_custom_call.1} parent=1 // loop_exit
      _
    %1543 = vsyncpa [#allocation7], 1
    %s1544 = scalar_lea.sflag [#allocation7], 1
    %1545 = vsyncpa %s1544, 1
    %1546 = vsyncpa [#allocation8], 1
    %s1547 = scalar_lea.sflag [#allocation8], 1
    %1548 = vsyncpa %s1547, 1

</llo_original>
